<compile_context>
chip_gen: v7x
topology: tpu7x:2x2x1
jax: 0.10.0
libtpu: 0.0.40
codegen_flags: <defaults>
</compile_context>

<pallas_src>
import functools
import math

import jax
import jax.numpy as jnp
from jax.experimental import pallas as pl
from jax.experimental.pallas import tpu as pltpu


def _layernorm(x, gamma, beta, eps=1e-5):
    mean = jnp.mean(x, axis=-1, keepdims=True)
    var = jnp.mean((x - mean) ** 2, axis=-1, keepdims=True)
    return (x - mean) * jax.lax.rsqrt(var + eps) * gamma + beta


def encoder_kernel(x_ref, mask_ref,
                   wqkv_ref, bqkv_ref, wo_ref, bo_ref, g1_ref, be1_ref,
                   w1_ref, b1_ref, w2_ref, b2_ref, g2_ref, be2_ref,
                   out_ref, *, seq, num_heads, d_k, d_v, mm_dtype):
    S, H = seq, num_heads
    x = x_ref[...]                                        # (S, D) f32 (residuals stay f32)

    def mm(a, b):
        # MXU matmul: operands optionally bf16, always f32 accumulation.
        return jnp.dot(a.astype(mm_dtype), b.astype(mm_dtype),
                       preferred_element_type=jnp.float32)

    # ---- Fused QKV projection: one MXU pass over x. ----
    qkv = mm(x, wqkv_ref[...]) + bqkv_ref[...]            # (S, 2*H*d_k + H*d_v)
    q = qkv[:, : H * d_k]
    k = qkv[:, H * d_k: 2 * H * d_k]
    v = qkv[:, 2 * H * d_k:]

    # ---- Head split: minor-dim reshape + one transpose to head-major. ----
    qh = q.reshape(S, H, d_k).transpose(1, 0, 2)          # (H, S, d_k)
    kh = k.reshape(S, H, d_k).transpose(1, 0, 2)          # (H, S, d_k)
    vh = v.reshape(S, H, d_v).transpose(1, 0, 2)          # (H, S, d_v)

    # ---- Scores: one head-batched contraction; mask REPLACES (torch semantics),
    #      broadcast over heads implicitly from a single (S, S) slab. ----
    scale = jnp.float32(1.0 / math.sqrt(d_k))
    scores = jnp.einsum("hqd,hkd->hqk",
                        qh.astype(mm_dtype), kh.astype(mm_dtype),
                        preferred_element_type=jnp.float32) * scale   # (H, S, S)
    scores = jnp.where(mask_ref[0][None, :, :] > 0, jnp.float32(-1e9), scores)

    # ---- Softmax in f32 with an exact divide (no approx reciprocal). ----
    m = jnp.max(scores, axis=-1, keepdims=True)
    p = jnp.exp(scores - m)
    attn = p / jnp.sum(p, axis=-1, keepdims=True)

    # ---- Context: second head-batched contraction, then one transpose +
    #      contiguous reshape back to (S, H*d_v) -- no concat. ----
    ctx = jnp.einsum("hqk,hkd->hqd",
                     attn.astype(mm_dtype), vh.astype(mm_dtype),
                     preferred_element_type=jnp.float32)   # (H, S, d_v)
    ctx = ctx.transpose(1, 0, 2).reshape(S, H * d_v)       # (S, H*d_v)

    attn_out = mm(ctx, wo_ref[...]) + bo_ref[...]          # (S, D)
    y1 = _layernorm(attn_out + x, g1_ref[...], be1_ref[...])

    # ---- Position-wise FFN: Linear -> ReLU -> Linear (elementwise kept f32). ----
    h1 = jnp.maximum(mm(y1, w1_ref[...]) + b1_ref[...], 0.0)
    ffn = mm(h1, w2_ref[...]) + b2_ref[...]

    # Single store per grid step. (At D=32 the store is lane-masked; moot once
    # D is a multiple of 128 at realistic sizes.)
    out_ref[...] = _layernorm(y1 + ffn, g2_ref[...], be2_ref[...])


def encoder_forward(x, mask, params, *, num_heads, d_k, d_v,
                    matmul_dtype=jnp.float32):
    B, S, D = x.shape
    x2 = x.reshape(B * S, D)          # fold batch into sublane rows (contiguous, free)

    # Fuse Q/K/V projection weights once, outside the kernel.
    wqkv = jnp.concatenate([params["wq"], params["wk"], params["wv"]], axis=1)
    bqkv = jnp.concatenate([params["bq"], params["bk"], params["bv"]], axis=1)

    kernel = functools.partial(encoder_kernel, seq=S, num_heads=num_heads,
                               d_k=d_k, d_v=d_v, mm_dtype=matmul_dtype)

    weight_args = (wqkv, bqkv, params["wo"], params["bo"],
                   params["g1"], params["be1"],
                   params["w1"], params["b1"], params["w2"], params["b2"],
                   params["g2"], params["be2"])

    def weight_spec(w):
        # Full-array block, constant index map: resident across grid steps.
        return pl.BlockSpec(w.shape, lambda b: (0, 0))

    in_specs = ([pl.BlockSpec((S, D), lambda b: (b, 0)),        # one sequence / step
                 pl.BlockSpec((1, S, S), lambda b: (b, 0, 0))]  # its (S,S) mask
                + [weight_spec(w) for w in weight_args])

    out2 = pl.pallas_call(
        kernel,
        out_shape=jax.ShapeDtypeStruct((B * S, D), jnp.float32),
        grid=(B,),                      # one batch element per step; parallel -> both
        in_specs=in_specs,              # v7x TensorCores get work, v5e/v6e pipeline.
        out_specs=pl.BlockSpec((S, D), lambda b: (b, 0)),
        compiler_params=pltpu.CompilerParams(
            dimension_semantics=("parallel",)),
    )(x2, mask, *weight_args)
    return out2.reshape(B, S, D)


def encoder_reference(x, mask, params, *, num_heads, d_k, d_v):
    """Pure-JAX reference of the PyTorch forward (eval mode)."""
    B, S, D = x.shape
    q = x @ params["wq"] + params["bq"]
    k = x @ params["wk"] + params["bk"]
    v = x @ params["wv"] + params["bv"]
    q = q.reshape(B, S, num_heads, d_k).transpose(0, 2, 1, 3)
    k = k.reshape(B, S, num_heads, d_k).transpose(0, 2, 1, 3)
    v = v.reshape(B, S, num_heads, d_v).transpose(0, 2, 1, 3)
    scores = jnp.einsum("bhqd,bhkd->bhqk", q, k) / math.sqrt(d_k)
    scores = jnp.where(mask[:, None, :, :] > 0, -1000000000.0, scores)
    attn = jax.nn.softmax(scores, axis=-1)
    ctx = jnp.einsum("bhqk,bhkd->bhqd", attn, v)
    ctx = ctx.transpose(0, 2, 1, 3).reshape(B, S, num_heads * d_v)
    out = ctx @ params["wo"] + params["bo"]
    y1 = _layernorm(out + x, params["g1"], params["be1"])
    h1 = jnp.maximum(y1 @ params["w1"] + params["b1"], 0.0)
    ffn = h1 @ params["w2"] + params["b2"]
    return _layernorm(y1 + ffn, params["g2"], params["be2"])


if __name__ == "__main__":
    # Small shapes consistent with the module.
    B, S = 2, 8
    D = 32                    # max_embedding_size
    Hh = 64                   # hidden_layer_size
    num_heads, d_k, d_v = 2, 8, 8

    key = jax.random.PRNGKey(0)
    keys = jax.random.split(key, 12)
    s = 0.05
    params = {
        "wq": jax.random.normal(keys[0], (D, num_heads * d_k), jnp.float32) * s,
        "bq": jax.random.normal(keys[1], (1, num_heads * d_k), jnp.float32) * s,
        "wk": jax.random.normal(keys[2], (D, num_heads * d_k), jnp.float32) * s,
        "bk": jax.random.normal(keys[3], (1, num_heads * d_k), jnp.float32) * s,
        "wv": jax.random.normal(keys[4], (D, num_heads * d_v), jnp.float32) * s,
        "bv": jax.random.normal(keys[5], (1, num_heads * d_v), jnp.float32) * s,
        "wo": jax.random.normal(keys[6], (num_heads * d_v, D), jnp.float32) * s,
        "bo": jax.random.normal(keys[7], (1, D), jnp.float32) * s,
        "g1": jnp.ones((1, D), jnp.float32),
        "be1": jnp.zeros((1, D), jnp.float32),
        "w1": jax.random.normal(keys[8], (D, Hh), jnp.float32) * s,
        "b1": jax.random.normal(keys[9], (1, Hh), jnp.float32) * s,
        "w2": jax.random.normal(keys[10], (Hh, D), jnp.float32) * s,
        "b2": jax.random.normal(keys[11], (1, D), jnp.float32) * s,
        "g2": jnp.ones((1, D), jnp.float32),
        "be2": jnp.zeros((1, D), jnp.float32),
    }

    x = jax.random.normal(jax.random.PRNGKey(42), (B, S, D), jnp.float32)
    # Padding-style self-attention mask: last 2 key positions masked (True -> -1e9).
    key_pad = jnp.zeros((B, S), jnp.int32).at[:, -2:].set(1)
    mask = jnp.broadcast_to(key_pad[:, None, :], (B, S, S)).astype(jnp.int32)

    ref = encoder_reference(x, mask, params, num_heads=num_heads, d_k=d_k, d_v=d_v)

    # f32 MXU operands: tight tolerance (exact softmax divide, all-f32 math).
    out = encoder_forward(x, mask, params, num_heads=num_heads, d_k=d_k, d_v=d_v)
    out = jax.block_until_ready(out)
    assert out.shape == (B, S, D)
    assert jnp.allclose(out, ref, atol=1e-4, rtol=1e-4), \
        float(jnp.max(jnp.abs(out - ref)))

    # bf16 MXU operands, f32 accumulation (the v6e/v7x throughput lever);
    # softmax / LayerNorm / residuals remain f32, hence only a bf16-rounding
    # sized tolerance relaxation.
    out_bf16 = encoder_forward(x, mask, params, num_heads=num_heads, d_k=d_k,
                               d_v=d_v, matmul_dtype=jnp.bfloat16)
    out_bf16 = jax.block_until_ready(out_bf16)
    assert jnp.allclose(out_bf16, ref, atol=3e-2, rtol=3e-2), \
        float(jnp.max(jnp.abs(out_bf16 - ref)))

    print("KERNEL_OK")
</pallas_src>

<mosaic_0001>
module attributes {stable_mosaic.version = 11 : i64} {
  func.func @encoder_kernel(%arg0: i32, %arg1: memref<8x32xf32, #tpu.memory_space<vmem>>, %arg2: memref<1x8x8xi32, #tpu.memory_space<vmem>>, %arg3: memref<32x48xf32, #tpu.memory_space<vmem>>, %arg4: memref<1x48xf32, #tpu.memory_space<vmem>>, %arg5: memref<16x32xf32, #tpu.memory_space<vmem>>, %arg6: memref<1x32xf32, #tpu.memory_space<vmem>>, %arg7: memref<1x32xf32, #tpu.memory_space<vmem>>, %arg8: memref<1x32xf32, #tpu.memory_space<vmem>>, %arg9: memref<32x64xf32, #tpu.memory_space<vmem>>, %arg10: memref<1x64xf32, #tpu.memory_space<vmem>>, %arg11: memref<64x32xf32, #tpu.memory_space<vmem>>, %arg12: memref<1x32xf32, #tpu.memory_space<vmem>>, %arg13: memref<1x32xf32, #tpu.memory_space<vmem>>, %arg14: memref<1x32xf32, #tpu.memory_space<vmem>>, %arg15: memref<8x32xf32, #tpu.memory_space<vmem>>) attributes {dimension_semantics = [#tpu.dimension_semantics<parallel>], iteration_bounds = array<i64: 2>, scalar_prefetch = 0 : i64, scratch_operands = 0 : i64, tpu.core_type = #tpu.core_type<tc>, window_params = [{transform_indices = @transform_0, window_bounds = array<i64: 8, 32>}, {transform_indices = @transform_1, window_bounds = array<i64: 1, 8, 8>}, {pipeline_mode = #tpu.pipeline_mode<synchronous>, transform_indices = @transform_2, window_bounds = array<i64: 32, 48>}, {pipeline_mode = #tpu.pipeline_mode<synchronous>, transform_indices = @transform_3, window_bounds = array<i64: 1, 48>}, {pipeline_mode = #tpu.pipeline_mode<synchronous>, transform_indices = @transform_4, window_bounds = array<i64: 16, 32>}, {pipeline_mode = #tpu.pipeline_mode<synchronous>, transform_indices = @transform_5, window_bounds = array<i64: 1, 32>}, {pipeline_mode = #tpu.pipeline_mode<synchronous>, transform_indices = @transform_6, window_bounds = array<i64: 1, 32>}, {pipeline_mode = #tpu.pipeline_mode<synchronous>, transform_indices = @transform_7, window_bounds = array<i64: 1, 32>}, {pipeline_mode = #tpu.pipeline_mode<synchronous>, transform_indices = @transform_8, window_bounds = array<i64: 32, 64>}, {pipeline_mode = #tpu.pipeline_mode<synchronous>, transform_indices = @transform_9, window_bounds = array<i64: 1, 64>}, {pipeline_mode = #tpu.pipeline_mode<synchronous>, transform_indices = @transform_10, window_bounds = array<i64: 64, 32>}, {pipeline_mode = #tpu.pipeline_mode<synchronous>, transform_indices = @transform_11, window_bounds = array<i64: 1, 32>}, {pipeline_mode = #tpu.pipeline_mode<synchronous>, transform_indices = @transform_12, window_bounds = array<i64: 1, 32>}, {pipeline_mode = #tpu.pipeline_mode<synchronous>, transform_indices = @transform_13, window_bounds = array<i64: 1, 32>}, {transform_indices = @transform_14, window_bounds = array<i64: 8, 32>}]} {
    %c0 = arith.constant 0 : index
    %c0_0 = arith.constant 0 : index
    %0 = vector.load %arg1[%c0, %c0_0] : memref<8x32xf32, #tpu.memory_space<vmem>>, vector<8x32xf32>
    %c0_1 = arith.constant 0 : index
    %c0_2 = arith.constant 0 : index
    %1 = vector.load %arg3[%c0_1, %c0_2] : memref<32x48xf32, #tpu.memory_space<vmem>>, vector<32x48xf32>
    %cst = arith.constant dense<0.000000e+00> : vector<8x48xf32>
    %2 = tpu.matmul %0, %1, %cst {dimension_numbers = #tpu.dot_dimension_numbers<[1], [0], [0], [1], [0, 0, 1, 1], [], []>} : vector<8x32xf32>, vector<32x48xf32>, vector<8x48xf32> -> vector<8x48xf32>
    %c0_3 = arith.constant 0 : index
    %c0_4 = arith.constant 0 : index
    %3 = vector.load %arg4[%c0_3, %c0_4] : memref<1x48xf32, #tpu.memory_space<vmem>>, vector<1x48xf32>
    %4 = vector.broadcast %3 : vector<1x48xf32> to vector<8x48xf32>
    %5 = arith.addf %2, %4 : vector<8x48xf32>
    %6 = vector.extract_strided_slice %5 {offsets = [0, 0], sizes = [8, 16], strides = [1, 1]} : vector<8x48xf32> to vector<8x16xf32>
    %7 = vector.extract_strided_slice %5 {offsets = [0, 16], sizes = [8, 16], strides = [1, 1]} : vector<8x48xf32> to vector<8x16xf32>
    %8 = vector.extract_strided_slice %5 {offsets = [0, 32], sizes = [8, 16], strides = [1, 1]} : vector<8x48xf32> to vector<8x16xf32>
    %9 = vector.shape_cast %6 : vector<8x16xf32> to vector<8x2x8xf32>
    %10 = tpu.transpose %9, [1, 0, 2] : vector<8x2x8xf32> -> vector<2x8x8xf32>
    %11 = vector.shape_cast %7 : vector<8x16xf32> to vector<8x2x8xf32>
    %12 = tpu.transpose %11, [1, 0, 2] : vector<8x2x8xf32> -> vector<2x8x8xf32>
    %13 = vector.shape_cast %8 : vector<8x16xf32> to vector<8x2x8xf32>
    %14 = tpu.transpose %13, [1, 0, 2] : vector<8x2x8xf32> -> vector<2x8x8xf32>
    "tpu.trace_start"() <{level = 10 : i32, message = "hqd,hkd->hqk"}> : () -> ()
    %cst_5 = arith.constant dense<0.000000e+00> : vector<2x8x8xf32>
    %15 = tpu.matmul %10, %12, %cst_5 {dimension_numbers = #tpu.dot_dimension_numbers<[2], [2], [1], [1], [0, 0, 0, 1, 1, 1], [0], [0]>} : vector<2x8x8xf32>, vector<2x8x8xf32>, vector<2x8x8xf32> -> vector<2x8x8xf32>
    "tpu.trace_stop"() : () -> ()
    %cst_6 = arith.constant 0.353553385 : f32
    %16 = vector.broadcast %cst_6 : f32 to vector<2x8x8xf32>
    %17 = arith.mulf %15, %16 : vector<2x8x8xf32>
    %c0_7 = arith.constant 0 : index
    %c0_8 = arith.constant 0 : index
    %c0_9 = arith.constant 0 : index
    %18 = vector.load %arg2[%c0_7, %c0_8, %c0_9] : memref<1x8x8xi32, #tpu.memory_space<vmem>>, vector<1x8x8xi32>
    %19 = vector.shape_cast %18 : vector<1x8x8xi32> to vector<8x8xi32>
    %20 = vector.shape_cast %19 : vector<8x8xi32> to vector<1x8x8xi32>
    %c0_i32 = arith.constant 0 : i32
    %21 = vector.broadcast %c0_i32 : i32 to vector<1x8x8xi32>
    %22 = arith.cmpi sgt, %20, %21 : vector<1x8x8xi32>
    %cst_10 = arith.constant -1.000000e+09 : f32
    %23 = vector.shape_cast %22 : vector<1x8x8xi1> to vector<1x8x8xi1>
    %24 = vector.broadcast %23 : vector<1x8x8xi1> to vector<2x8x8xi1>
    %25 = vector.broadcast %cst_10 : f32 to vector<2x8x8xf32>
    %26 = arith.select %24, %25, %17 : vector<2x8x8xi1>, vector<2x8x8xf32>
    %cst_11 = arith.constant dense<0xFF800000> : vector<2x8xf32>
    %27 = vector.multi_reduction <maximumf>, %26, %cst_11 [2] : vector<2x8x8xf32> to vector<2x8xf32>
    %28 = vector.shape_cast %27 : vector<2x8xf32> to vector<2x8x1xf32>
    %29 = vector.broadcast %28 : vector<2x8x1xf32> to vector<2x8x8xf32>
    %30 = arith.subf %26, %29 : vector<2x8x8xf32>
    %31 = math.exp %30 : vector<2x8x8xf32>
    %cst_12 = arith.constant dense<0.000000e+00> : vector<2x8xf32>
    %32 = vector.multi_reduction <add>, %31, %cst_12 [2] : vector<2x8x8xf32> to vector<2x8xf32>
    %33 = vector.shape_cast %32 : vector<2x8xf32> to vector<2x8x1xf32>
    %34 = vector.broadcast %33 : vector<2x8x1xf32> to vector<2x8x8xf32>
    %35 = arith.divf %31, %34 : vector<2x8x8xf32>
    "tpu.trace_start"() <{level = 10 : i32, message = "hqk,hkd->hqd"}> : () -> ()
    %cst_13 = arith.constant dense<0.000000e+00> : vector<2x8x8xf32>
    %36 = tpu.matmul %35, %14, %cst_13 {dimension_numbers = #tpu.dot_dimension_numbers<[2], [1], [1], [2], [0, 0, 0, 1, 1, 2], [0], [0]>} : vector<2x8x8xf32>, vector<2x8x8xf32>, vector<2x8x8xf32> -> vector<2x8x8xf32>
    "tpu.trace_stop"() : () -> ()
    %37 = tpu.transpose %36, [1, 0, 2] : vector<2x8x8xf32> -> vector<8x2x8xf32>
    %38 = vector.shape_cast %37 : vector<8x2x8xf32> to vector<8x16xf32>
    %c0_14 = arith.constant 0 : index
    %c0_15 = arith.constant 0 : index
    %39 = vector.load %arg5[%c0_14, %c0_15] : memref<16x32xf32, #tpu.memory_space<vmem>>, vector<16x32xf32>
    %cst_16 = arith.constant dense<0.000000e+00> : vector<8x32xf32>
    %40 = tpu.matmul %38, %39, %cst_16 {dimension_numbers = #tpu.dot_dimension_numbers<[1], [0], [0], [1], [0, 0, 1, 1], [], []>} : vector<8x16xf32>, vector<16x32xf32>, vector<8x32xf32> -> vector<8x32xf32>
    %c0_17 = arith.constant 0 : index
    %c0_18 = arith.constant 0 : index
    %41 = vector.load %arg6[%c0_17, %c0_18] : memref<1x32xf32, #tpu.memory_space<vmem>>, vector<1x32xf32>
    %42 = vector.broadcast %41 : vector<1x32xf32> to vector<8x32xf32>
    %43 = arith.addf %40, %42 : vector<8x32xf32>
    %44 = arith.addf %43, %0 : vector<8x32xf32>
    %c0_19 = arith.constant 0 : index
    %c0_20 = arith.constant 0 : index
    %45 = vector.load %arg7[%c0_19, %c0_20] : memref<1x32xf32, #tpu.memory_space<vmem>>, vector<1x32xf32>
    %c0_21 = arith.constant 0 : index
    %c0_22 = arith.constant 0 : index
    %46 = vector.load %arg8[%c0_21, %c0_22] : memref<1x32xf32, #tpu.memory_space<vmem>>, vector<1x32xf32>
    %cst_23 = arith.constant dense<0.000000e+00> : vector<8xf32>
    %47 = vector.multi_reduction <add>, %44, %cst_23 [1] : vector<8x32xf32> to vector<8xf32>
    %48 = vector.shape_cast %47 : vector<8xf32> to vector<8x1xf32>
    %cst_24 = arith.constant 3.200000e+01 : f32
    %49 = vector.broadcast %cst_24 : f32 to vector<8x1xf32>
    %50 = arith.divf %48, %49 : vector<8x1xf32>
    %51 = vector.broadcast %50 : vector<8x1xf32> to vector<8x32xf32>
    %52 = arith.subf %44, %51 : vector<8x32xf32>
    %53 = arith.mulf %52, %52 : vector<8x32xf32>
    %cst_25 = arith.constant dense<0.000000e+00> : vector<8xf32>
    %54 = vector.multi_reduction <add>, %53, %cst_25 [1] : vector<8x32xf32> to vector<8xf32>
    %55 = vector.shape_cast %54 : vector<8xf32> to vector<8x1xf32>
    %cst_26 = arith.constant 3.200000e+01 : f32
    %56 = vector.broadcast %cst_26 : f32 to vector<8x1xf32>
    %57 = arith.divf %55, %56 : vector<8x1xf32>
    %58 = vector.broadcast %50 : vector<8x1xf32> to vector<8x32xf32>
    %59 = arith.subf %44, %58 : vector<8x32xf32>
    %cst_27 = arith.constant 9.99999974E-6 : f32
    %60 = vector.broadcast %cst_27 : f32 to vector<8x1xf32>
    %61 = arith.addf %57, %60 : vector<8x1xf32>
    %62 = math.rsqrt %61 : vector<8x1xf32>
    %63 = vector.broadcast %62 : vector<8x1xf32> to vector<8x32xf32>
    %64 = arith.mulf %59, %63 : vector<8x32xf32>
    %65 = vector.broadcast %45 : vector<1x32xf32> to vector<8x32xf32>
    %66 = arith.mulf %64, %65 : vector<8x32xf32>
    %67 = vector.broadcast %46 : vector<1x32xf32> to vector<8x32xf32>
    %68 = arith.addf %66, %67 : vector<8x32xf32>
    %c0_28 = arith.constant 0 : index
    %c0_29 = arith.constant 0 : index
    %69 = vector.load %arg9[%c0_28, %c0_29] : memref<32x64xf32, #tpu.memory_space<vmem>>, vector<32x64xf32>
    %cst_30 = arith.constant dense<0.000000e+00> : vector<8x64xf32>
    %70 = tpu.matmul %68, %69, %cst_30 {dimension_numbers = #tpu.dot_dimension_numbers<[1], [0], [0], [1], [0, 0, 1, 1], [], []>} : vector<8x32xf32>, vector<32x64xf32>, vector<8x64xf32> -> vector<8x64xf32>
    %c0_31 = arith.constant 0 : index
    %c0_32 = arith.constant 0 : index
    %71 = vector.load %arg10[%c0_31, %c0_32] : memref<1x64xf32, #tpu.memory_space<vmem>>, vector<1x64xf32>
    %72 = vector.broadcast %71 : vector<1x64xf32> to vector<8x64xf32>
    %73 = arith.addf %70, %72 : vector<8x64xf32>
    %cst_33 = arith.constant 0.000000e+00 : f32
    %74 = vector.broadcast %cst_33 : f32 to vector<8x64xf32>
    %75 = arith.maximumf %73, %74 : vector<8x64xf32>
    %c0_34 = arith.constant 0 : index
    %c0_35 = arith.constant 0 : index
    %76 = vector.load %arg11[%c0_34, %c0_35] : memref<64x32xf32, #tpu.memory_space<vmem>>, vector<64x32xf32>
    %cst_36 = arith.constant dense<0.000000e+00> : vector<8x32xf32>
    %77 = tpu.matmul %75, %76, %cst_36 {dimension_numbers = #tpu.dot_dimension_numbers<[1], [0], [0], [1], [0, 0, 1, 1], [], []>} : vector<8x64xf32>, vector<64x32xf32>, vector<8x32xf32> -> vector<8x32xf32>
    %c0_37 = arith.constant 0 : index
    %c0_38 = arith.constant 0 : index
    %78 = vector.load %arg12[%c0_37, %c0_38] : memref<1x32xf32, #tpu.memory_space<vmem>>, vector<1x32xf32>
    %79 = vector.broadcast %78 : vector<1x32xf32> to vector<8x32xf32>
    %80 = arith.addf %77, %79 : vector<8x32xf32>
    %81 = arith.addf %68, %80 : vector<8x32xf32>
    %c0_39 = arith.constant 0 : index
    %c0_40 = arith.constant 0 : index
    %82 = vector.load %arg13[%c0_39, %c0_40] : memref<1x32xf32, #tpu.memory_space<vmem>>, vector<1x32xf32>
    %c0_41 = arith.constant 0 : index
    %c0_42 = arith.constant 0 : index
    %83 = vector.load %arg14[%c0_41, %c0_42] : memref<1x32xf32, #tpu.memory_space<vmem>>, vector<1x32xf32>
    %cst_43 = arith.constant dense<0.000000e+00> : vector<8xf32>
    %84 = vector.multi_reduction <add>, %81, %cst_43 [1] : vector<8x32xf32> to vector<8xf32>
    %85 = vector.shape_cast %84 : vector<8xf32> to vector<8x1xf32>
    %cst_44 = arith.constant 3.200000e+01 : f32
    %86 = vector.broadcast %cst_44 : f32 to vector<8x1xf32>
    %87 = arith.divf %85, %86 : vector<8x1xf32>
    %88 = vector.broadcast %87 : vector<8x1xf32> to vector<8x32xf32>
    %89 = arith.subf %81, %88 : vector<8x32xf32>
    %90 = arith.mulf %89, %89 : vector<8x32xf32>
    %cst_45 = arith.constant dense<0.000000e+00> : vector<8xf32>
    %91 = vector.multi_reduction <add>, %90, %cst_45 [1] : vector<8x32xf32> to vector<8xf32>
    %92 = vector.shape_cast %91 : vector<8xf32> to vector<8x1xf32>
    %cst_46 = arith.constant 3.200000e+01 : f32
    %93 = vector.broadcast %cst_46 : f32 to vector<8x1xf32>
    %94 = arith.divf %92, %93 : vector<8x1xf32>
    %95 = vector.broadcast %87 : vector<8x1xf32> to vector<8x32xf32>
    %96 = arith.subf %81, %95 : vector<8x32xf32>
    %cst_47 = arith.constant 9.99999974E-6 : f32
    %97 = vector.broadcast %cst_47 : f32 to vector<8x1xf32>
    %98 = arith.addf %94, %97 : vector<8x1xf32>
    %99 = math.rsqrt %98 : vector<8x1xf32>
    %100 = vector.broadcast %99 : vector<8x1xf32> to vector<8x32xf32>
    %101 = arith.mulf %96, %100 : vector<8x32xf32>
    %102 = vector.broadcast %82 : vector<1x32xf32> to vector<8x32xf32>
    %103 = arith.mulf %101, %102 : vector<8x32xf32>
    %104 = vector.broadcast %83 : vector<1x32xf32> to vector<8x32xf32>
    %105 = arith.addf %103, %104 : vector<8x32xf32>
    %c0_48 = arith.constant 0 : index
    %c0_49 = arith.constant 0 : index
    %106 = vector.load %arg15[%c0_48, %c0_49] : memref<8x32xf32, #tpu.memory_space<vmem>>, vector<8x32xf32>
    tpu.vector_store %arg15[%c0_48, %c0_49], %105 {strides = array<i32>} : memref<8x32xf32, #tpu.memory_space<vmem>>, vector<8x32xf32>,
    return
  }
  func.func @transform_0(%arg0: i32) -> (i32, i32) {
    %c0_i32 = arith.constant 0 : i32
    %c0_i32_0 = arith.constant 0 : i32
    return %arg0, %c0_i32 : i32, i32
  }
  func.func @transform_1(%arg0: i32) -> (i32, i32, i32) {
    %c0_i32 = arith.constant 0 : i32
    %c0_i32_0 = arith.constant 0 : i32
    %c0_i32_1 = arith.constant 0 : i32
    return %arg0, %c0_i32, %c0_i32_0 : i32, i32, i32
  }
  func.func @transform_2(%arg0: i32) -> (i32, i32) {
    %c0_i32 = arith.constant 0 : i32
    %c0_i32_0 = arith.constant 0 : i32
    %c0_i32_1 = arith.constant 0 : i32
    return %c0_i32, %c0_i32_0 : i32, i32
  }
  func.func @transform_3(%arg0: i32) -> (i32, i32) {
    %c0_i32 = arith.constant 0 : i32
    %c0_i32_0 = arith.constant 0 : i32
    %c0_i32_1 = arith.constant 0 : i32
    return %c0_i32, %c0_i32_0 : i32, i32
  }
  func.func @transform_4(%arg0: i32) -> (i32, i32) {
    %c0_i32 = arith.constant 0 : i32
    %c0_i32_0 = arith.constant 0 : i32
    %c0_i32_1 = arith.constant 0 : i32
    return %c0_i32, %c0_i32_0 : i32, i32
  }
  func.func @transform_5(%arg0: i32) -> (i32, i32) {
    %c0_i32 = arith.constant 0 : i32
    %c0_i32_0 = arith.constant 0 : i32
    %c0_i32_1 = arith.constant 0 : i32
    return %c0_i32, %c0_i32_0 : i32, i32
  }
  func.func @transform_6(%arg0: i32) -> (i32, i32) {
    %c0_i32 = arith.constant 0 : i32
    %c0_i32_0 = arith.constant 0 : i32
    %c0_i32_1 = arith.constant 0 : i32
    return %c0_i32, %c0_i32_0 : i32, i32
  }
  func.func @transform_7(%arg0: i32) -> (i32, i32) {
    %c0_i32 = arith.constant 0 : i32
    %c0_i32_0 = arith.constant 0 : i32
    %c0_i32_1 = arith.constant 0 : i32
    return %c0_i32, %c0_i32_0 : i32, i32
  }
  func.func @transform_8(%arg0: i32) -> (i32, i32) {
    %c0_i32 = arith.constant 0 : i32
    %c0_i32_0 = arith.constant 0 : i32
    %c0_i32_1 = arith.constant 0 : i32
    return %c0_i32, %c0_i32_0 : i32, i32
  }
  func.func @transform_9(%arg0: i32) -> (i32, i32) {
    %c0_i32 = arith.constant 0 : i32
    %c0_i32_0 = arith.constant 0 : i32
    %c0_i32_1 = arith.constant 0 : i32
    return %c0_i32, %c0_i32_0 : i32, i32
  }
  func.func @transform_10(%arg0: i32) -> (i32, i32) {
    %c0_i32 = arith.constant 0 : i32
    %c0_i32_0 = arith.constant 0 : i32
    %c0_i32_1 = arith.constant 0 : i32
    return %c0_i32, %c0_i32_0 : i32, i32
  }
  func.func @transform_11(%arg0: i32) -> (i32, i32) {
    %c0_i32 = arith.constant 0 : i32
    %c0_i32_0 = arith.constant 0 : i32
    %c0_i32_1 = arith.constant 0 : i32
    return %c0_i32, %c0_i32_0 : i32, i32
  }
  func.func @transform_12(%arg0: i32) -> (i32, i32) {
    %c0_i32 = arith.constant 0 : i32
    %c0_i32_0 = arith.constant 0 : i32
    %c0_i32_1 = arith.constant 0 : i32
    return %c0_i32, %c0_i32_0 : i32, i32
  }
  func.func @transform_13(%arg0: i32) -> (i32, i32) {
    %c0_i32 = arith.constant 0 : i32
    %c0_i32_0 = arith.constant 0 : i32
    %c0_i32_1 = arith.constant 0 : i32
    return %c0_i32, %c0_i32_0 : i32, i32
  }
  func.func @transform_14(%arg0: i32) -> (i32, i32) {
    %c0_i32 = arith.constant 0 : i32
    %c0_i32_0 = arith.constant 0 : i32
    return %arg0, %c0_i32 : i32, i32
  }
}

</mosaic_0001>

<llo_original>
// kernel: tpu_custom_call.1
$region0: #{tpu_custom_call.1}
  #allocation0 [shape = 'u32[]', space=smem, size = 0x4, offset = 0x4, fixed_abs, tag = 'smem constant byte address 0x4 - core index']
  #allocation1 [shape = 'u32[144,128]{1,0:T(1,128)}', space=vmem, size = 0x12000, scoped, tag = 'internal scratch']
  %s0 = inlined_call_operand.vmem [shape: f32[16,32], index: 0, kind: input, shape index: {}]
  %s1 = inlined_call_operand.vmem [shape: s32[2,8,8], index: 1, kind: input, shape index: {}]
  %s2 = inlined_call_operand.vmem [shape: f32[32,48], index: 2, kind: input, shape index: {}]
  %s3 = inlined_call_operand.vmem [shape: f32[1,48], index: 3, kind: input, shape index: {}]
  %s4 = inlined_call_operand.hbm [shape: f32[16,32], index: 4, kind: input, shape index: {}]
  %s5 = inlined_call_operand.vmem [shape: f32[1,32], index: 5, kind: input, shape index: {}]
  %s6 = inlined_call_operand.vmem [shape: f32[1,32], index: 6, kind: input, shape index: {}]
  %s7 = inlined_call_operand.vmem [shape: f32[1,32], index: 7, kind: input, shape index: {}]
  %s8 = inlined_call_operand.vmem [shape: f32[32,64], index: 8, kind: input, shape index: {}]
  %s9 = inlined_call_operand.vmem [shape: f32[1,64], index: 9, kind: input, shape index: {}]
  %s10 = inlined_call_operand.vmem [shape: f32[64,32], index: 10, kind: input, shape index: {}]
  %s11 = inlined_call_operand.vmem [shape: f32[1,32], index: 11, kind: input, shape index: {}]
  %s12 = inlined_call_operand.vmem [shape: f32[1,32], index: 12, kind: input, shape index: {}]
  %s13 = inlined_call_operand.vmem [shape: f32[1,32], index: 13, kind: input, shape index: {}]
  %s14 = inlined_call_operand.hbm [shape: f32[16,32], index: 14, kind: output, shape index: {}]
  %s15 = sld [smem:[#allocation0]]
  $region93: #{tpu_custom_call.1} parent=0
    _
  %s17 = ssub.s32 1, %s15
  %s18 = scalar_select 0, %s17, %s15
  $region1: #{tpu_custom_call.1} parent=0
    #allocation2 [shape = 'u8[8192]{0}', space=vmem, size = 0x2000, scoped, tag = 'input window, operand 4, single buffered']
    #allocation3 [shape = 's32[2]{0}', space=sflag, size = 0x8, scoped, tag = 'scoped memory for tpu_custom_call.1']
    #allocation4 [shape = 's32[2]{0}', space=sflag, size = 0x8, scoped, tag = 'scoped memory for tpu_custom_call.1']
    #allocation5 [shape = 'u8[8192]{0}', space=vmem, size = 0x2000, scoped, tag = 'output window, operand 0']
    %19 = vsyncpa [#allocation3], 0
    %20 = vsyncpa [#allocation4], 0
    %s21 = scalar_lea.sflag [#allocation4], 1
    %22 = vsyncpa %s21, 0
    loop: start=0, step=1, limit=4
    $region2: #{tpu_custom_call.1} parent=1 // loop_pre_header
      _
    $region3: #{tpu_custom_call.1} parent=1 // loop_header
      %s24 = sphi 0, %s28
      %p25 = scmp.ge.s32.totalorder %s24, 4
      %s34 = sphi 0, %s36
      %s37 = sphi 0, %s34
      %s38 = sphi 0, %s37
      %s54 = sphi 0, %s38
      %s60 = sphi 0, %s62
      %s63 = sphi 0, %s60
      %s64 = sphi 0, %s63
      %s80 = sphi 0, %s64
      %s84 = sphi 0, %s84
      %s86 = sphi 0, %s84
      %s87 = sphi 0, %s86
      %s101 = sphi 0, %s87
      %s105 = sphi 0, %s105
      %s107 = sphi 0, %s105
      %s108 = sphi 0, %s107
      %s122 = sphi 0, %s108
      %s126 = sphi 0, %s126
      %s128 = sphi 0, %s126
      %s129 = sphi 0, %s128
      %s143 = sphi 0, %s129
      %s147 = sphi 0, %s147
      %s149 = sphi 0, %s147
      %s150 = sphi 0, %s149
      %s164 = sphi 0, %s150
      %s168 = sphi 0, %s168
      %s170 = sphi 0, %s168
      %s171 = sphi 0, %s170
      %s185 = sphi 0, %s171
      %s189 = sphi 0, %s189
      %s191 = sphi 0, %s189
      %s192 = sphi 0, %s191
      %s206 = sphi 0, %s192
      %s210 = sphi 0, %s210
      %s212 = sphi 0, %s210
      %s213 = sphi 0, %s212
      %s227 = sphi 0, %s213
      %s231 = sphi 0, %s231
      %s233 = sphi 0, %s231
      %s234 = sphi 0, %s233
      %s248 = sphi 0, %s234
      %s252 = sphi 0, %s252
      %s254 = sphi 0, %s252
      %s255 = sphi 0, %s254
      %s269 = sphi 0, %s255
      %s273 = sphi 0, %s273
      %s275 = sphi 0, %s273
      %s276 = sphi 0, %s275
      %s290 = sphi 0, %s276
      %s294 = sphi 0, %s294
      %s296 = sphi 0, %s294
      %s297 = sphi 0, %s296
      %s311 = sphi 0, %s297
      %s315 = sphi 0, %s315
      %s317 = sphi 0, %s315
      %s318 = sphi 0, %s317
      %s332 = sphi 0, %s318
      %s338 = sphi 0, %s340
      %s341 = sphi 0, %s338
      %s342 = sphi 0, %s341
      %s358 = sphi 0, %s342
    $region4: #{tpu_custom_call.1} parent=1 // loop_header_branch
      %27 = sbr.rel (%p25) target = $region8
    $region5: #{tpu_custom_call.1} parent=1 // loop_body
      %s29 = ssub.s32 %s24, 1
      %s30 = ssub.s32 %s24, 2
      %s31 = sadd.s32 %s24, 1
      %s32 = ssub.s32 %s24, %s31
      %p33 = scmp.eq.s32.totalorder %s32, 0
      %s35 = sadd.s32 %s34, 1
      %s36 = scalar_select %p33, %s34, %s35
      %p39 = pneg %p33
      %p40 = scmp.eq.s32.totalorder %s24, 1
      %p41 = por %p39, %p40
      %p42 = scmp.ne.s32.totalorder %s34, %s37
      %p43 = scmp.eq.s32.totalorder %s24, 0
      %p44 = por %p42, %p43
      %p45 = scmp.ne.s32.totalorder %s34, %s37
      %p46 = scmp.eq.s32.totalorder %s29, 1
      %p47 = por %p45, %p46
      %p48 = scmp.ne.s32.totalorder %s37, %s38
      %p49 = scmp.eq.s32.totalorder %s29, 0
      %p50 = por %p48, %p49
      %p51 = scmp.ne.s32.totalorder %s37, %s38
      %p52 = scmp.eq.s32.totalorder %s30, 1
      %p53 = por %p51, %p52
      %p55 = scmp.ne.s32.totalorder %s38, %s54
      %p56 = scmp.eq.s32.totalorder %s30, 0
      %p57 = por %p55, %p56
      %s58 = ssub.s32 %s24, %s31
      %p59 = scmp.eq.s32.totalorder %s58, 0
      %s61 = sadd.s32 %s60, 1
      %s62 = scalar_select %p59, %s60, %s61
      %p65 = pneg %p59
      %p66 = scmp.eq.s32.totalorder %s24, 1
      %p67 = por %p65, %p66
      %p68 = scmp.ne.s32.totalorder %s60, %s63
      %p69 = scmp.eq.s32.totalorder %s24, 0
      %p70 = por %p68, %p69
      %p71 = scmp.ne.s32.totalorder %s60, %s63
      %p72 = scmp.eq.s32.totalorder %s29, 1
      %p73 = por %p71, %p72
      %p74 = scmp.ne.s32.totalorder %s63, %s64
      %p75 = scmp.eq.s32.totalorder %s29, 0
      %p76 = por %p74, %p75
      %p77 = scmp.ne.s32.totalorder %s63, %s64
      %p78 = scmp.eq.s32.totalorder %s30, 1
      %p79 = por %p77, %p78
      %p81 = scmp.ne.s32.totalorder %s64, %s80
      %p82 = scmp.eq.s32.totalorder %s30, 0
      %p83 = por %p81, %p82
      %s85 = sadd.s32 %s84, 1
      %p88 = scmp.eq.s32.totalorder %s24, 1
      %p89 = scmp.ne.s32.totalorder %s84, %s86
      %p90 = scmp.eq.s32.totalorder %s24, 0
      %p91 = por %p89, %p90
      %p92 = scmp.ne.s32.totalorder %s84, %s86
      %p93 = scmp.eq.s32.totalorder %s29, 1
      %p94 = por %p92, %p93
      %p95 = scmp.ne.s32.totalorder %s86, %s87
      %p96 = scmp.eq.s32.totalorder %s29, 0
      %p97 = por %p95, %p96
      %p98 = scmp.ne.s32.totalorder %s86, %s87
      %p99 = scmp.eq.s32.totalorder %s30, 1
      %p100 = por %p98, %p99
      %p102 = scmp.ne.s32.totalorder %s87, %s101
      %p103 = scmp.eq.s32.totalorder %s30, 0
      %p104 = por %p102, %p103
      %s106 = sadd.s32 %s105, 1
      %p109 = scmp.eq.s32.totalorder %s24, 1
      %p110 = scmp.ne.s32.totalorder %s105, %s107
      %p111 = scmp.eq.s32.totalorder %s24, 0
      %p112 = por %p110, %p111
      %p113 = scmp.ne.s32.totalorder %s105, %s107
      %p114 = scmp.eq.s32.totalorder %s29, 1
      %p115 = por %p113, %p114
      %p116 = scmp.ne.s32.totalorder %s107, %s108
      %p117 = scmp.eq.s32.totalorder %s29, 0
      %p118 = por %p116, %p117
      %p119 = scmp.ne.s32.totalorder %s107, %s108
      %p120 = scmp.eq.s32.totalorder %s30, 1
      %p121 = por %p119, %p120
      %p123 = scmp.ne.s32.totalorder %s108, %s122
      %p124 = scmp.eq.s32.totalorder %s30, 0
      %p125 = por %p123, %p124
      %s127 = sadd.s32 %s126, 1
      %p130 = scmp.eq.s32.totalorder %s24, 1
      %p131 = scmp.ne.s32.totalorder %s126, %s128
      %p132 = scmp.eq.s32.totalorder %s24, 0
      %p133 = por %p131, %p132
      %p134 = scmp.ne.s32.totalorder %s126, %s128
      %p135 = scmp.eq.s32.totalorder %s29, 1
      %p136 = por %p134, %p135
      %p137 = scmp.ne.s32.totalorder %s128, %s129
      %p138 = scmp.eq.s32.totalorder %s29, 0
      %p139 = por %p137, %p138
      %p140 = scmp.ne.s32.totalorder %s128, %s129
      %p141 = scmp.eq.s32.totalorder %s30, 1
      %p142 = por %p140, %p141
      %p144 = scmp.ne.s32.totalorder %s129, %s143
      %p145 = scmp.eq.s32.totalorder %s30, 0
      %p146 = por %p144, %p145
      %s148 = sadd.s32 %s147, 1
      %p151 = scmp.eq.s32.totalorder %s24, 1
      %p152 = scmp.ne.s32.totalorder %s147, %s149
      %p153 = scmp.eq.s32.totalorder %s24, 0
      %p154 = por %p152, %p153
      %p155 = scmp.ne.s32.totalorder %s147, %s149
      %p156 = scmp.eq.s32.totalorder %s29, 1
      %p157 = por %p155, %p156
      %p158 = scmp.ne.s32.totalorder %s149, %s150
      %p159 = scmp.eq.s32.totalorder %s29, 0
      %p160 = por %p158, %p159
      %p161 = scmp.ne.s32.totalorder %s149, %s150
      %p162 = scmp.eq.s32.totalorder %s30, 1
      %p163 = por %p161, %p162
      %p165 = scmp.ne.s32.totalorder %s150, %s164
      %p166 = scmp.eq.s32.totalorder %s30, 0
      %p167 = por %p165, %p166
      %s169 = sadd.s32 %s168, 1
      %p172 = scmp.eq.s32.totalorder %s24, 1
      %p173 = scmp.ne.s32.totalorder %s168, %s170
      %p174 = scmp.eq.s32.totalorder %s24, 0
      %p175 = por %p173, %p174
      %p176 = scmp.ne.s32.totalorder %s168, %s170
      %p177 = scmp.eq.s32.totalorder %s29, 1
      %p178 = por %p176, %p177
      %p179 = scmp.ne.s32.totalorder %s170, %s171
      %p180 = scmp.eq.s32.totalorder %s29, 0
      %p181 = por %p179, %p180
      %p182 = scmp.ne.s32.totalorder %s170, %s171
      %p183 = scmp.eq.s32.totalorder %s30, 1
      %p184 = por %p182, %p183
      %p186 = scmp.ne.s32.totalorder %s171, %s185
      %p187 = scmp.eq.s32.totalorder %s30, 0
      %p188 = por %p186, %p187
      %s190 = sadd.s32 %s189, 1
      %p193 = scmp.eq.s32.totalorder %s24, 1
      %p194 = scmp.ne.s32.totalorder %s189, %s191
      %p195 = scmp.eq.s32.totalorder %s24, 0
      %p196 = por %p194, %p195
      %p197 = scmp.ne.s32.totalorder %s189, %s191
      %p198 = scmp.eq.s32.totalorder %s29, 1
      %p199 = por %p197, %p198
      %p200 = scmp.ne.s32.totalorder %s191, %s192
      %p201 = scmp.eq.s32.totalorder %s29, 0
      %p202 = por %p200, %p201
      %p203 = scmp.ne.s32.totalorder %s191, %s192
      %p204 = scmp.eq.s32.totalorder %s30, 1
      %p205 = por %p203, %p204
      %p207 = scmp.ne.s32.totalorder %s192, %s206
      %p208 = scmp.eq.s32.totalorder %s30, 0
      %p209 = por %p207, %p208
      %s211 = sadd.s32 %s210, 1
      %p214 = scmp.eq.s32.totalorder %s24, 1
      %p215 = scmp.ne.s32.totalorder %s210, %s212
      %p216 = scmp.eq.s32.totalorder %s24, 0
      %p217 = por %p215, %p216
      %p218 = scmp.ne.s32.totalorder %s210, %s212
      %p219 = scmp.eq.s32.totalorder %s29, 1
      %p220 = por %p218, %p219
      %p221 = scmp.ne.s32.totalorder %s212, %s213
      %p222 = scmp.eq.s32.totalorder %s29, 0
      %p223 = por %p221, %p222
      %p224 = scmp.ne.s32.totalorder %s212, %s213
      %p225 = scmp.eq.s32.totalorder %s30, 1
      %p226 = por %p224, %p225
      %p228 = scmp.ne.s32.totalorder %s213, %s227
      %p229 = scmp.eq.s32.totalorder %s30, 0
      %p230 = por %p228, %p229
      %s232 = sadd.s32 %s231, 1
      %p235 = scmp.eq.s32.totalorder %s24, 1
      %p236 = scmp.ne.s32.totalorder %s231, %s233
      %p237 = scmp.eq.s32.totalorder %s24, 0
      %p238 = por %p236, %p237
      %p239 = scmp.ne.s32.totalorder %s231, %s233
      %p240 = scmp.eq.s32.totalorder %s29, 1
      %p241 = por %p239, %p240
      %p242 = scmp.ne.s32.totalorder %s233, %s234
      %p243 = scmp.eq.s32.totalorder %s29, 0
      %p244 = por %p242, %p243
      %p245 = scmp.ne.s32.totalorder %s233, %s234
      %p246 = scmp.eq.s32.totalorder %s30, 1
      %p247 = por %p245, %p246
      %p249 = scmp.ne.s32.totalorder %s234, %s248
      %p250 = scmp.eq.s32.totalorder %s30, 0
      %p251 = por %p249, %p250
      %s253 = sadd.s32 %s252, 1
      %p256 = scmp.eq.s32.totalorder %s24, 1
      %p257 = scmp.ne.s32.totalorder %s252, %s254
      %p258 = scmp.eq.s32.totalorder %s24, 0
      %p259 = por %p257, %p258
      %p260 = scmp.ne.s32.totalorder %s252, %s254
      %p261 = scmp.eq.s32.totalorder %s29, 1
      %p262 = por %p260, %p261
      %p263 = scmp.ne.s32.totalorder %s254, %s255
      %p264 = scmp.eq.s32.totalorder %s29, 0
      %p265 = por %p263, %p264
      %p266 = scmp.ne.s32.totalorder %s254, %s255
      %p267 = scmp.eq.s32.totalorder %s30, 1
      %p268 = por %p266, %p267
      %p270 = scmp.ne.s32.totalorder %s255, %s269
      %p271 = scmp.eq.s32.totalorder %s30, 0
      %p272 = por %p270, %p271
      %s274 = sadd.s32 %s273, 1
      %p277 = scmp.eq.s32.totalorder %s24, 1
      %p278 = scmp.ne.s32.totalorder %s273, %s275
      %p279 = scmp.eq.s32.totalorder %s24, 0
      %p280 = por %p278, %p279
      %p281 = scmp.ne.s32.totalorder %s273, %s275
      %p282 = scmp.eq.s32.totalorder %s29, 1
      %p283 = por %p281, %p282
      %p284 = scmp.ne.s32.totalorder %s275, %s276
      %p285 = scmp.eq.s32.totalorder %s29, 0
      %p286 = por %p284, %p285
      %p287 = scmp.ne.s32.totalorder %s275, %s276
      %p288 = scmp.eq.s32.totalorder %s30, 1
      %p289 = por %p287, %p288
      %p291 = scmp.ne.s32.totalorder %s276, %s290
      %p292 = scmp.eq.s32.totalorder %s30, 0
      %p293 = por %p291, %p292
      %s295 = sadd.s32 %s294, 1
      %p298 = scmp.eq.s32.totalorder %s24, 1
      %p299 = scmp.ne.s32.totalorder %s294, %s296
      %p300 = scmp.eq.s32.totalorder %s24, 0
      %p301 = por %p299, %p300
      %p302 = scmp.ne.s32.totalorder %s294, %s296
      %p303 = scmp.eq.s32.totalorder %s29, 1
      %p304 = por %p302, %p303
      %p305 = scmp.ne.s32.totalorder %s296, %s297
      %p306 = scmp.eq.s32.totalorder %s29, 0
      %p307 = por %p305, %p306
      %p308 = scmp.ne.s32.totalorder %s296, %s297
      %p309 = scmp.eq.s32.totalorder %s30, 1
      %p310 = por %p308, %p309
      %p312 = scmp.ne.s32.totalorder %s297, %s311
      %p313 = scmp.eq.s32.totalorder %s30, 0
      %p314 = por %p312, %p313
      %s316 = sadd.s32 %s315, 1
      %p319 = scmp.eq.s32.totalorder %s24, 1
      %p320 = scmp.ne.s32.totalorder %s315, %s317
      %p321 = scmp.eq.s32.totalorder %s24, 0
      %p322 = por %p320, %p321
      %p323 = scmp.ne.s32.totalorder %s315, %s317
      %p324 = scmp.eq.s32.totalorder %s29, 1
      %p325 = por %p323, %p324
      %p326 = scmp.ne.s32.totalorder %s317, %s318
      %p327 = scmp.eq.s32.totalorder %s29, 0
      %p328 = por %p326, %p327
      %p329 = scmp.ne.s32.totalorder %s317, %s318
      %p330 = scmp.eq.s32.totalorder %s30, 1
      %p331 = por %p329, %p330
      %p333 = scmp.ne.s32.totalorder %s318, %s332
      %p334 = scmp.eq.s32.totalorder %s30, 0
      %p335 = por %p333, %p334
      %s336 = ssub.s32 %s24, %s31
      %p337 = scmp.eq.s32.totalorder %s336, 0
      %s339 = sadd.s32 %s338, 1
      %s340 = scalar_select %p337, %s338, %s339
      %p343 = pneg %p337
      %p344 = scmp.eq.s32.totalorder %s24, 1
      %p345 = por %p343, %p344
      %p346 = scmp.ne.s32.totalorder %s338, %s341
      %p347 = scmp.eq.s32.totalorder %s24, 0
      %p348 = por %p346, %p347
      %p349 = scmp.ne.s32.totalorder %s338, %s341
      %p350 = scmp.eq.s32.totalorder %s29, 1
      %p351 = por %p349, %p350
      %p352 = scmp.ne.s32.totalorder %s341, %s342
      %p353 = scmp.eq.s32.totalorder %s29, 0
      %p354 = por %p352, %p353
      %p355 = scmp.ne.s32.totalorder %s341, %s342
      %p356 = scmp.eq.s32.totalorder %s30, 1
      %p357 = por %p355, %p356
      %p359 = scmp.ne.s32.totalorder %s342, %s358
      %p360 = scmp.eq.s32.totalorder %s30, 0
      %p361 = por %p359, %p360
      %p362 = scmp.le.s32.totalorder 1, %s24
      %p363 = scmp.lt.s32.totalorder %s24, 3
      %p364 = pnand %p362, %p363
      %p365 = pneg %p364
      // Predicated region
      $region9: #{tpu_custom_call.1} parent=5 // pred_check
        _
      $region10: #{tpu_custom_call.1} parent=5 // pred_check_branch
        %367 = sbr.rel (%p364) target = $region12
      $region11: #{tpu_custom_call.1} parent=5 // pred_region
        %s368 = ssub.s32 %s24, 1
        // Predicated region
        $region13: #{tpu_custom_call.1} parent=11 // pred_check
          %p369 = pneg %p97
        $region14: #{tpu_custom_call.1} parent=11 // pred_check_branch
          %371 = sbr.rel (%p369) target = $region16
        $region15: #{tpu_custom_call.1} parent=11 // pred_region
          _
        $region16: #{tpu_custom_call.1} parent=11 // pred_fallthru
          _
        // Predicated region
        $region17: #{tpu_custom_call.1} parent=11 // pred_check
          %p372 = pneg %p118
        $region18: #{tpu_custom_call.1} parent=11 // pred_check_branch
          %374 = sbr.rel (%p372) target = $region20
        $region19: #{tpu_custom_call.1} parent=11 // pred_region
          _
        $region20: #{tpu_custom_call.1} parent=11 // pred_fallthru
          _
        // Predicated region
        $region21: #{tpu_custom_call.1} parent=11 // pred_check
          %p375 = pneg %p139
        $region22: #{tpu_custom_call.1} parent=11 // pred_check_branch
          %377 = sbr.rel (%p375) target = $region24
        $region23: #{tpu_custom_call.1} parent=11 // pred_region
          %s379 = ssub.s32 256, 256
          %380 = vsyncadd [#allocation3], %s379
          %s381 = sshll.u32 [#allocation2], 4
          %s382 = int_to_ptr.vmem [resolvable:$true] %s381
          %387 = dma.hbm_to_vmem [thread:$0]  %s4, 256, %s382, [#allocation3], 128, 128, 8
        $region24: #{tpu_custom_call.1} parent=11 // pred_fallthru
          _
        // Predicated region
        $region25: #{tpu_custom_call.1} parent=11 // pred_check
          %p388 = pneg %p160
        $region26: #{tpu_custom_call.1} parent=11 // pred_check_branch
          %390 = sbr.rel (%p388) target = $region28
        $region27: #{tpu_custom_call.1} parent=11 // pred_region
          _
        $region28: #{tpu_custom_call.1} parent=11 // pred_fallthru
          _
        // Predicated region
        $region29: #{tpu_custom_call.1} parent=11 // pred_check
          %p391 = pneg %p181
        $region30: #{tpu_custom_call.1} parent=11 // pred_check_branch
          %393 = sbr.rel (%p391) target = $region32
        $region31: #{tpu_custom_call.1} parent=11 // pred_region
          _
        $region32: #{tpu_custom_call.1} parent=11 // pred_fallthru
          _
        // Predicated region
        $region33: #{tpu_custom_call.1} parent=11 // pred_check
          %p394 = pneg %p202
        $region34: #{tpu_custom_call.1} parent=11 // pred_check_branch
          %396 = sbr.rel (%p394) target = $region36
        $region35: #{tpu_custom_call.1} parent=11 // pred_region
          _
        $region36: #{tpu_custom_call.1} parent=11 // pred_fallthru
          _
        // Predicated region
        $region37: #{tpu_custom_call.1} parent=11 // pred_check
          %p397 = pneg %p223
        $region38: #{tpu_custom_call.1} parent=11 // pred_check_branch
          %399 = sbr.rel (%p397) target = $region40
        $region39: #{tpu_custom_call.1} parent=11 // pred_region
          _
        $region40: #{tpu_custom_call.1} parent=11 // pred_fallthru
          _
        // Predicated region
        $region41: #{tpu_custom_call.1} parent=11 // pred_check
          %p400 = pneg %p244
        $region42: #{tpu_custom_call.1} parent=11 // pred_check_branch
          %402 = sbr.rel (%p400) target = $region44
        $region43: #{tpu_custom_call.1} parent=11 // pred_region
          _
        $region44: #{tpu_custom_call.1} parent=11 // pred_fallthru
          _
        // Predicated region
        $region45: #{tpu_custom_call.1} parent=11 // pred_check
          %p403 = pneg %p265
        $region46: #{tpu_custom_call.1} parent=11 // pred_check_branch
          %405 = sbr.rel (%p403) target = $region48
        $region47: #{tpu_custom_call.1} parent=11 // pred_region
          _
        $region48: #{tpu_custom_call.1} parent=11 // pred_fallthru
          _
        // Predicated region
        $region49: #{tpu_custom_call.1} parent=11 // pred_check
          %p406 = pneg %p286
        $region50: #{tpu_custom_call.1} parent=11 // pred_check_branch
          %408 = sbr.rel (%p406) target = $region52
        $region51: #{tpu_custom_call.1} parent=11 // pred_region
          _
        $region52: #{tpu_custom_call.1} parent=11 // pred_fallthru
          _
        // Predicated region
        $region53: #{tpu_custom_call.1} parent=11 // pred_check
          %p409 = pneg %p307
        $region54: #{tpu_custom_call.1} parent=11 // pred_check_branch
          %411 = sbr.rel (%p409) target = $region56
        $region55: #{tpu_custom_call.1} parent=11 // pred_region
          _
        $region56: #{tpu_custom_call.1} parent=11 // pred_fallthru
          _
        // Predicated region
        $region57: #{tpu_custom_call.1} parent=11 // pred_check
          %p412 = pneg %p328
        $region58: #{tpu_custom_call.1} parent=11 // pred_check_branch
          %414 = sbr.rel (%p412) target = $region60
        $region59: #{tpu_custom_call.1} parent=11 // pred_region
          _
        $region60: #{tpu_custom_call.1} parent=11 // pred_fallthru
          _
      $region12: #{tpu_custom_call.1} parent=5 // pred_fallthru
        _
      %p415 = scmp.lt.s32.totalorder %s24, 2
      // Predicated region
      $region61: #{tpu_custom_call.1} parent=5 // pred_check
        %p416 = pneg %p415
      $region62: #{tpu_custom_call.1} parent=5 // pred_check_branch
        %418 = sbr.rel (%p416) target = $region64
      $region63: #{tpu_custom_call.1} parent=5 // pred_region
        // Predicated region
        $region65: #{tpu_custom_call.1} parent=63 // pred_check
          %p419 = pneg %p44
        $region66: #{tpu_custom_call.1} parent=63 // pred_check_branch
          %421 = sbr.rel (%p419) target = $region68
        $region67: #{tpu_custom_call.1} parent=63 // pred_region
          %p422 = scmp.lt.s32.totalorder %s24, 1
          %s423 = scalar_select %p422, %s24, 1
          %s424 = smul.addr %s423, 8
          %s425 = scalar_lea.vmem %s0, %s424
        $region68: #{tpu_custom_call.1} parent=63 // pred_fallthru
          _
        // Predicated region
        $region69: #{tpu_custom_call.1} parent=63 // pred_check
          %p426 = pneg %p70
        $region70: #{tpu_custom_call.1} parent=63 // pred_check_branch
          %428 = sbr.rel (%p426) target = $region72
        $region71: #{tpu_custom_call.1} parent=63 // pred_region
          %p429 = scmp.lt.s32.totalorder %s24, 1
          %s430 = scalar_select %p429, %s24, 1
          %s431 = smul.addr %s430, 8
          %s432 = scalar_lea.vmem %s1, %s431
        $region72: #{tpu_custom_call.1} parent=63 // pred_fallthru
          _
      $region64: #{tpu_custom_call.1} parent=5 // pred_fallthru
        _
      %p433 = scmp.le.s32.totalorder 1, %s24
      %p434 = scmp.lt.s32.totalorder %s24, 3
      %p435 = pnand %p433, %p434
      %p436 = pneg %p435
      // Predicated region
      $region73: #{tpu_custom_call.1} parent=5 // pred_check
        _
      $region74: #{tpu_custom_call.1} parent=5 // pred_check_branch
        %438 = sbr.rel (%p435) target = $region76
      $region75: #{tpu_custom_call.1} parent=5 // pred_region
        %s439 = ssub.s32 %s24, 1
        // Predicated region
        $region77: #{tpu_custom_call.1} parent=75 // pred_check
          %p440 = pneg %p139
        $region78: #{tpu_custom_call.1} parent=75 // pred_check_branch
          %442 = sbr.rel (%p440) target = $region80
        $region79: #{tpu_custom_call.1} parent=75 // pred_region
          %443 = dma.done [#allocation3], 256
        $region80: #{tpu_custom_call.1} parent=75 // pred_fallthru
          _
        %p444 = scmp.lt.s32.totalorder %s29, 1
        %s445 = scalar_select %p444, %s29, 1
        %s446 = smul.addr %s445, 8
        %s447 = scalar_lea.vmem %s0, %s446
        %p448 = pneg %p50
        %p449 = pneg %p47
        %p450 = scmp.lt.s32.totalorder %s29, 1
        %s451 = scalar_select %p450, %s29, 1
        %s452 = smul.addr %s451, 8
        %s453 = scalar_lea.vmem %s1, %s452
        %p454 = pneg %p76
        %p455 = pneg %p73
        %p456 = pneg %p97
        %p457 = pneg %p94
        %p458 = pneg %p118
        %p459 = pneg %p115
        %p460 = pneg %p139
        %p461 = pneg %p136
        %p462 = pneg %p160
        %p463 = pneg %p157
        %p464 = pneg %p181
        %p465 = pneg %p178
        %p466 = pneg %p202
        %p467 = pneg %p199
        %p468 = pneg %p223
        %p469 = pneg %p220
        %p470 = pneg %p244
        %p471 = pneg %p241
        %p472 = pneg %p265
        %p473 = pneg %p262
        %p474 = pneg %p286
        %p475 = pneg %p283
        %p476 = pneg %p307
        %p477 = pneg %p304
        %p478 = pneg %p328
        %p479 = pneg %p325
        %p480 = pneg %p354
        %p481 = pneg %p351
        %s482 = sand.u32 %s341, 1
        %s483 = scalar_lea.sflag [#allocation4], %s482
        %s484 = sand.u32 %s341, 1
        %s485 = smul.addr %s484, 8
        %s486 = scalar_lea.vmem [#allocation5], %s485
        %p487 = scmp.lt.s32.totalorder %s29, 1
        %s488 = scalar_select %p487, %s29, 1
        %s489 = smul.addr %s488, 8
        %s490 = scalar_lea.vmem %s0, %s489
        %p491 = scmp.lt.s32.totalorder %s29, 1
        %s492 = scalar_select %p491, %s29, 1
        %s493 = smul.addr %s492, 8
        %s494 = scalar_lea.vmem %s1, %s493
        %v495 = vld [vmem:[%s490] sm:$0xff]
        %v496 = vld [vmem:[%s2] sm:$0xff]
        %v497 = vld [vmem:[%s2 + $0x8] sm:$0xff]
        %v498 = vld [vmem:[%s2 + $0x10] sm:$0xff]
        %v499 = vld [vmem:[%s2 + $0x18] sm:$0xff]
        %v500 = vld [vmem:[%s3] sm:$0x1]
        %v502 = vlaneseq
        %v503 = vshrl.u32 %v502, 7
        %v504 = vsub.s32 0, %v503
        %v505 = vrot.slane %v500, %v504
        %vm507 = vcmask 261120
        %v509 = vsel %vm507, %v495, 0
        %511 = vmatprep.subr.mxu0 0.0
        %512 = vmatpush1.msra.mxu0 %v496
        %513 = vmatprep.subr.mxu0 0.0
        %514 = vmatpush1.msra.mxu0 %v497
        %515 = vmatprep.subr.mxu0 0.0
        %516 = vmatpush1.msra.mxu0 %v498
        %517 = vmatprep.subr.mxu0 0.0
        %518 = vmatpush1.msra.mxu0 %v499
        %519 = vmatprep.subr.mxu0 0.0
        %520 = vmatpush1.msra.mxu0 0.0
        %521 = vmatprep.subr.mxu0 0.0
        %522 = vmatpush1.msra.mxu0 0.0
        %523 = vmatprep.subr.mxu0 0.0
        %524 = vmatpush1.msra.mxu0 0.0
        %525 = vmatprep.subr.mxu0 0.0
        %526 = vmatpush1.msra.mxu0 0.0
        %527 = vmatprep.subr.mxu0 0.0
        %528 = vmatpush1.msra.mxu0 0.0
        %529 = vmatprep.subr.mxu0 0.0
        %530 = vmatpush1.msra.mxu0 0.0
        %531 = vmatprep.subr.mxu0 0.0
        %532 = vmatpush1.msra.mxu0 0.0
        %533 = vmatprep.subr.mxu0 0.0
        %534 = vmatpush1.msra.mxu0 0.0
        %535 = vmatprep.subr.mxu0 0.0
        %536 = vmatpush1.msra.mxu0 0.0
        %537 = vmatprep.subr.mxu0 0.0
        %538 = vmatpush1.msra.mxu0 0.0
        %539 = vmatprep.subr.mxu0 0.0
        %540 = vmatpush1.msra.mxu0 0.0
        %541 = vmatprep.subr.mxu0 0.0
        %542 = vmatpush1.msra.mxu0 0.0
        %543 = vmatprep.subr.mxu0 0.0
        %544 = vmatpush1.msra.mxu0 0.0
        %545 = vmatprep.subr.mxu0 0.0
        %546 = vmatpush1.msra.mxu0 0.0
        %547 = vmatprep.subr.mxu0 0.0
        %548 = vmatpush1.msra.mxu0 0.0
        %549 = vmatprep.subr.mxu0 0.0
        %550 = vmatpush1.msra.mxu0 0.0
        %551 = vmatprep.subr.mxu0 0.0
        %552 = vmatpush1.msra.mxu0 0.0
        %553 = vmatprep.subr.mxu0 0.0
        %554 = vmatpush1.msra.mxu0 0.0
        %555 = vmatprep.subr.mxu0 0.0
        %556 = vmatpush1.msra.mxu0 0.0
        %557 = vmatprep.subr.mxu0 0.0
        %558 = vmatpush1.msra.mxu0 0.0
        %559 = vmatprep.subr.mxu0 0.0
        %560 = vmatpush1.msra.mxu0 0.0
        %561 = vmatprep.subr.mxu0 0.0
        %562 = vmatpush1.msra.mxu0 0.0
        %563 = vmatprep.subr.mxu0 0.0
        %564 = vmatpush1.msra.mxu0 0.0
        %565 = vmatprep.subr.mxu0 0.0
        %566 = vmatpush1.msra.mxu0 0.0
        %567 = vmatprep.subr.mxu0 0.0
        %568 = vmatpush1.msra.mxu0 0.0
        %569 = vmatprep.subr.mxu0 0.0
        %570 = vmatpush1.msra.mxu0 0.0
        %571 = vmatprep.subr.mxu0 0.0
        %572 = vmatpush1.msra.mxu0 0.0
        %573 = vmatprep.subr.mxu0 0.0
        %574 = vmatpush1.msra.mxu0 0.0
        %575 = vmatprep.mubr.f32.mxu0 0.0
        %576 = vmatmul.mubr.f32.gmra.mrb[0].mxu0 %v509
        %v577 = vpop.f32.mrb[0].mxu0
        %v578 = vadd.f32 %v505, %v577
        %v579 = vpop.f32.mrb[0].mxu0
        %580 = vdwg.mxu0
        %582 = vrot.lane.b32.xlu0 %v578, 120
        %v583 = vpop.permute.xlu0 %582
        %v585 = vcombine.high %v578, 0.0
        %v587 = vunpack.c.l.s4 1983009808
        %v588 = vunpack.c.0.s8 %v587
        %v589 = vlaneseq
        %v590 = vshrl.u32 %v589, 7
        %v591 = vsub.s32 %v588, %v590
        %v592 = vrot.slane %v578, %v591
        %v594 = vunpack.c.l.s4 1983009808
        %v595 = vunpack.c.0.s8 %v594
        %v596 = vlaneseq
        %v597 = vshrl.u32 %v596, 7
        %v598 = vsub.s32 %v595, %v597
        %v599 = vrot.slane %v585, %v598
        %v600 = vcombine.high %v583, 0.0
        %v602 = vunpack.c.l.s4 1983009808
        %v603 = vunpack.c.0.s8 %v602
        %v604 = vlaneseq
        %v605 = vshrl.u32 %v604, 7
        %v606 = vsub.s32 %v603, %v605
        %v607 = vrot.slane %v583, %v606
        %v609 = vunpack.c.l.s4 1983009808
        %v610 = vunpack.c.0.s8 %v609
        %v611 = vlaneseq
        %v612 = vshrl.u32 %v611, 7
        %v613 = vsub.s32 %v610, %v612
        %v614 = vrot.slane %v600, %v613
        %v615 = vcombine.low %v592, %v607
        %v616 = vcombine.high %v592, %v607
        %v618 = vunpack.c.l.s4 1934713408
        %v619 = vunpack.c.0.s8 %v618
        %v620 = vlaneseq
        %v621 = vshrl.u32 %v620, 7
        %v622 = vsub.s32 %v619, %v621
        %v623 = vrot.slane %v615, %v622
        %v625 = vunpack.c.l.s4 1934713408
        %v626 = vunpack.c.0.s8 %v625
        %v627 = vlaneseq
        %v628 = vshrl.u32 %v627, 7
        %v629 = vsub.s32 %v626, %v628
        %v630 = vrot.slane %v616, %v629
        %v631 = vcombine.low %v599, %v614
        %v632 = vcombine.high %v599, %v614
        %v634 = vunpack.c.l.s4 1934713408
        %v635 = vunpack.c.0.s8 %v634
        %v636 = vlaneseq
        %v637 = vshrl.u32 %v636, 7
        %v638 = vsub.s32 %v635, %v637
        %v639 = vrot.slane %v631, %v638
        %v641 = vunpack.c.l.s4 1934713408
        %v642 = vunpack.c.0.s8 %v641
        %v643 = vlaneseq
        %v644 = vshrl.u32 %v643, 7
        %v645 = vsub.s32 %v642, %v644
        %v646 = vrot.slane %v632, %v645
        %v647 = vcombine.high %v623, 0.0
        %v648 = vcombine.high %v630, 0.0
        %v649 = vcombine.high %v639, 0.0
        %v650 = vcombine.high %v646, 0.0
        %v651 = vcombine.low %v623, %v630
        %v653 = vunpack.c.l.s4 1983009808
        %v654 = vunpack.c.0.s8 %v653
        %v655 = vlaneseq
        %v656 = vshrl.u32 %v655, 7
        %v657 = vsub.s32 %v654, %v656
        %v658 = vrot.slane %v651, %v657
        %v659 = vcombine.low %v647, %v648
        %v661 = vunpack.c.l.s4 1983009808
        %v662 = vunpack.c.0.s8 %v661
        %v663 = vlaneseq
        %v664 = vshrl.u32 %v663, 7
        %v665 = vsub.s32 %v662, %v664
        %v666 = vrot.slane %v659, %v665
        %v667 = vcombine.low %v639, %v646
        %v669 = vunpack.c.l.s4 1983009808
        %v670 = vunpack.c.0.s8 %v669
        %v671 = vlaneseq
        %v672 = vshrl.u32 %v671, 7
        %v673 = vsub.s32 %v670, %v672
        %v674 = vrot.slane %v667, %v673
        %v675 = vcombine.low %v649, %v650
        %v677 = vunpack.c.l.s4 1983009808
        %v678 = vunpack.c.0.s8 %v677
        %v679 = vlaneseq
        %v680 = vshrl.u32 %v679, 7
        %v681 = vsub.s32 %v678, %v680
        %v682 = vrot.slane %v675, %v681
        %v683 = vcombine.low %v658, %v666
        %v685 = vunpack.c.l.s4 1934713408
        %v686 = vunpack.c.0.s8 %v685
        %v687 = vlaneseq
        %v688 = vshrl.u32 %v687, 7
        %v689 = vsub.s32 %v686, %v688
        %v690 = vrot.slane %v683, %v689
        %v691 = vcombine.low %v674, %v682
        %v693 = vunpack.c.l.s4 1934713408
        %v694 = vunpack.c.0.s8 %v693
        %v695 = vlaneseq
        %v696 = vshrl.u32 %v695, 7
        %v697 = vsub.s32 %v694, %v696
        %v698 = vrot.slane %v691, %v697
        %v699 = vcombine.low %v690, %v698
        %v700 = vcombine.high %v690, %v698
        %701 = vrot.lane.b32.xlu0 %v578, 112
        %v702 = vpop.permute.xlu0 %701
        %703 = vrot.lane.b32.xlu0 %v583, 112
        %v704 = vpop.permute.xlu0 %703
        %v707 = vcombine.high %v702, 0.0
        %v709 = vunpack.c.l.s4 1983009808
        %v710 = vunpack.c.0.s8 %v709
        %v711 = vlaneseq
        %v712 = vshrl.u32 %v711, 7
        %v713 = vsub.s32 %v710, %v712
        %v714 = vrot.slane %v702, %v713
        %v716 = vunpack.c.l.s4 1983009808
        %v717 = vunpack.c.0.s8 %v716
        %v718 = vlaneseq
        %v719 = vshrl.u32 %v718, 7
        %v720 = vsub.s32 %v717, %v719
        %v721 = vrot.slane %v707, %v720
        %v722 = vcombine.high %v704, 0.0
        %v724 = vunpack.c.l.s4 1983009808
        %v725 = vunpack.c.0.s8 %v724
        %v726 = vlaneseq
        %v727 = vshrl.u32 %v726, 7
        %v728 = vsub.s32 %v725, %v727
        %v729 = vrot.slane %v704, %v728
        %v731 = vunpack.c.l.s4 1983009808
        %v732 = vunpack.c.0.s8 %v731
        %v733 = vlaneseq
        %v734 = vshrl.u32 %v733, 7
        %v735 = vsub.s32 %v732, %v734
        %v736 = vrot.slane %v722, %v735
        %v737 = vcombine.low %v714, %v729
        %v738 = vcombine.high %v714, %v729
        %v740 = vunpack.c.l.s4 1934713408
        %v741 = vunpack.c.0.s8 %v740
        %v742 = vlaneseq
        %v743 = vshrl.u32 %v742, 7
        %v744 = vsub.s32 %v741, %v743
        %v745 = vrot.slane %v737, %v744
        %v747 = vunpack.c.l.s4 1934713408
        %v748 = vunpack.c.0.s8 %v747
        %v749 = vlaneseq
        %v750 = vshrl.u32 %v749, 7
        %v751 = vsub.s32 %v748, %v750
        %v752 = vrot.slane %v738, %v751
        %v753 = vcombine.low %v721, %v736
        %v754 = vcombine.high %v721, %v736
        %v756 = vunpack.c.l.s4 1934713408
        %v757 = vunpack.c.0.s8 %v756
        %v758 = vlaneseq
        %v759 = vshrl.u32 %v758, 7
        %v760 = vsub.s32 %v757, %v759
        %v761 = vrot.slane %v753, %v760
        %v763 = vunpack.c.l.s4 1934713408
        %v764 = vunpack.c.0.s8 %v763
        %v765 = vlaneseq
        %v766 = vshrl.u32 %v765, 7
        %v767 = vsub.s32 %v764, %v766
        %v768 = vrot.slane %v754, %v767
        %v769 = vcombine.high %v745, 0.0
        %v770 = vcombine.high %v752, 0.0
        %v771 = vcombine.high %v761, 0.0
        %v772 = vcombine.high %v768, 0.0
        %v773 = vcombine.low %v745, %v752
        %v775 = vunpack.c.l.s4 1983009808
        %v776 = vunpack.c.0.s8 %v775
        %v777 = vlaneseq
        %v778 = vshrl.u32 %v777, 7
        %v779 = vsub.s32 %v776, %v778
        %v780 = vrot.slane %v773, %v779
        %v781 = vcombine.low %v769, %v770
        %v783 = vunpack.c.l.s4 1983009808
        %v784 = vunpack.c.0.s8 %v783
        %v785 = vlaneseq
        %v786 = vshrl.u32 %v785, 7
        %v787 = vsub.s32 %v784, %v786
        %v788 = vrot.slane %v781, %v787
        %v789 = vcombine.low %v761, %v768
        %v791 = vunpack.c.l.s4 1983009808
        %v792 = vunpack.c.0.s8 %v791
        %v793 = vlaneseq
        %v794 = vshrl.u32 %v793, 7
        %v795 = vsub.s32 %v792, %v794
        %v796 = vrot.slane %v789, %v795
        %v797 = vcombine.low %v771, %v772
        %v799 = vunpack.c.l.s4 1983009808
        %v800 = vunpack.c.0.s8 %v799
        %v801 = vlaneseq
        %v802 = vshrl.u32 %v801, 7
        %v803 = vsub.s32 %v800, %v802
        %v804 = vrot.slane %v797, %v803
        %v805 = vcombine.low %v780, %v788
        %v807 = vunpack.c.l.s4 1934713408
        %v808 = vunpack.c.0.s8 %v807
        %v809 = vlaneseq
        %v810 = vshrl.u32 %v809, 7
        %v811 = vsub.s32 %v808, %v810
        %v812 = vrot.slane %v805, %v811
        %v813 = vcombine.low %v796, %v804
        %v815 = vunpack.c.l.s4 1934713408
        %v816 = vunpack.c.0.s8 %v815
        %v817 = vlaneseq
        %v818 = vshrl.u32 %v817, 7
        %v819 = vsub.s32 %v816, %v818
        %v820 = vrot.slane %v813, %v819
        %v821 = vcombine.low %v812, %v820
        %v822 = vcombine.high %v812, %v820
        %823 = vrot.lane.b32.xlu0 %v578, 96
        %v824 = vpop.permute.xlu0 %823
        %825 = vrot.lane.b32.xlu0 %v583, 96
        %v826 = vpop.permute.xlu0 %825
        %v829 = vcombine.high %v824, 0.0
        %v831 = vunpack.c.l.s4 1983009808
        %v832 = vunpack.c.0.s8 %v831
        %v833 = vlaneseq
        %v834 = vshrl.u32 %v833, 7
        %v835 = vsub.s32 %v832, %v834
        %v836 = vrot.slane %v824, %v835
        %v838 = vunpack.c.l.s4 1983009808
        %v839 = vunpack.c.0.s8 %v838
        %v840 = vlaneseq
        %v841 = vshrl.u32 %v840, 7
        %v842 = vsub.s32 %v839, %v841
        %v843 = vrot.slane %v829, %v842
        %v844 = vcombine.high %v826, 0.0
        %v846 = vunpack.c.l.s4 1983009808
        %v847 = vunpack.c.0.s8 %v846
        %v848 = vlaneseq
        %v849 = vshrl.u32 %v848, 7
        %v850 = vsub.s32 %v847, %v849
        %v851 = vrot.slane %v826, %v850
        %v853 = vunpack.c.l.s4 1983009808
        %v854 = vunpack.c.0.s8 %v853
        %v855 = vlaneseq
        %v856 = vshrl.u32 %v855, 7
        %v857 = vsub.s32 %v854, %v856
        %v858 = vrot.slane %v844, %v857
        %v859 = vcombine.low %v836, %v851
        %v860 = vcombine.high %v836, %v851
        %v862 = vunpack.c.l.s4 1934713408
        %v863 = vunpack.c.0.s8 %v862
        %v864 = vlaneseq
        %v865 = vshrl.u32 %v864, 7
        %v866 = vsub.s32 %v863, %v865
        %v867 = vrot.slane %v859, %v866
        %v869 = vunpack.c.l.s4 1934713408
        %v870 = vunpack.c.0.s8 %v869
        %v871 = vlaneseq
        %v872 = vshrl.u32 %v871, 7
        %v873 = vsub.s32 %v870, %v872
        %v874 = vrot.slane %v860, %v873
        %v875 = vcombine.low %v843, %v858
        %v876 = vcombine.high %v843, %v858
        %v878 = vunpack.c.l.s4 1934713408
        %v879 = vunpack.c.0.s8 %v878
        %v880 = vlaneseq
        %v881 = vshrl.u32 %v880, 7
        %v882 = vsub.s32 %v879, %v881
        %v883 = vrot.slane %v875, %v882
        %v885 = vunpack.c.l.s4 1934713408
        %v886 = vunpack.c.0.s8 %v885
        %v887 = vlaneseq
        %v888 = vshrl.u32 %v887, 7
        %v889 = vsub.s32 %v886, %v888
        %v890 = vrot.slane %v876, %v889
        %v891 = vcombine.high %v867, 0.0
        %v892 = vcombine.high %v874, 0.0
        %v893 = vcombine.high %v883, 0.0
        %v894 = vcombine.high %v890, 0.0
        %v895 = vcombine.low %v867, %v874
        %v897 = vunpack.c.l.s4 1983009808
        %v898 = vunpack.c.0.s8 %v897
        %v899 = vlaneseq
        %v900 = vshrl.u32 %v899, 7
        %v901 = vsub.s32 %v898, %v900
        %v902 = vrot.slane %v895, %v901
        %v903 = vcombine.low %v891, %v892
        %v905 = vunpack.c.l.s4 1983009808
        %v906 = vunpack.c.0.s8 %v905
        %v907 = vlaneseq
        %v908 = vshrl.u32 %v907, 7
        %v909 = vsub.s32 %v906, %v908
        %v910 = vrot.slane %v903, %v909
        %v911 = vcombine.low %v883, %v890
        %v913 = vunpack.c.l.s4 1983009808
        %v914 = vunpack.c.0.s8 %v913
        %v915 = vlaneseq
        %v916 = vshrl.u32 %v915, 7
        %v917 = vsub.s32 %v914, %v916
        %v918 = vrot.slane %v911, %v917
        %v919 = vcombine.low %v893, %v894
        %v921 = vunpack.c.l.s4 1983009808
        %v922 = vunpack.c.0.s8 %v921
        %v923 = vlaneseq
        %v924 = vshrl.u32 %v923, 7
        %v925 = vsub.s32 %v922, %v924
        %v926 = vrot.slane %v919, %v925
        %v927 = vcombine.low %v902, %v910
        %v929 = vunpack.c.l.s4 1934713408
        %v930 = vunpack.c.0.s8 %v929
        %v931 = vlaneseq
        %v932 = vshrl.u32 %v931, 7
        %v933 = vsub.s32 %v930, %v932
        %v934 = vrot.slane %v927, %v933
        %v935 = vcombine.low %v918, %v926
        %v937 = vunpack.c.l.s4 1934713408
        %v938 = vunpack.c.0.s8 %v937
        %v939 = vlaneseq
        %v940 = vshrl.u32 %v939, 7
        %v941 = vsub.s32 %v938, %v940
        %v942 = vrot.slane %v935, %v941
        %v943 = vcombine.low %v934, %v942
        %v944 = vcombine.high %v934, %v942
        %vm945 = vcmask 64512
        %v947 = vsel %vm945, %v699, 0
        %v950 = vsel %vm945, %v821, 0
        %952 = vmatprep.subr.mxu0 0.0
        %953 = vmatpush1.xpose.msra.mxu0 %v950
        %954 = vmatprep.subr.mxu0 0.0
        %955 = vmatpush1.xpose.msra.mxu0 0.0
        %956 = vmatprep.subr.mxu0 0.0
        %957 = vmatpush1.xpose.msra.mxu0 0.0
        %958 = vmatprep.subr.mxu0 0.0
        %959 = vmatpush1.xpose.msra.mxu0 0.0
        %960 = vmatprep.subr.mxu0 0.0
        %961 = vmatpush1.xpose.msra.mxu0 0.0
        %962 = vmatprep.subr.mxu0 0.0
        %963 = vmatpush1.xpose.msra.mxu0 0.0
        %964 = vmatprep.subr.mxu0 0.0
        %965 = vmatpush1.xpose.msra.mxu0 0.0
        %966 = vmatprep.subr.mxu0 0.0
        %967 = vmatpush1.xpose.msra.mxu0 0.0
        %968 = vmatprep.subr.mxu0 0.0
        %969 = vmatpush1.xpose.msra.mxu0 0.0
        %970 = vmatprep.subr.mxu0 0.0
        %971 = vmatpush1.xpose.msra.mxu0 0.0
        %972 = vmatprep.subr.mxu0 0.0
        %973 = vmatpush1.xpose.msra.mxu0 0.0
        %974 = vmatprep.subr.mxu0 0.0
        %975 = vmatpush1.xpose.msra.mxu0 0.0
        %976 = vmatprep.subr.mxu0 0.0
        %977 = vmatpush1.xpose.msra.mxu0 0.0
        %978 = vmatprep.subr.mxu0 0.0
        %979 = vmatpush1.xpose.msra.mxu0 0.0
        %980 = vmatprep.subr.mxu0 0.0
        %981 = vmatpush1.xpose.msra.mxu0 0.0
        %982 = vmatprep.subr.mxu0 0.0
        %983 = vmatpush1.xpose.msra.mxu0 0.0
        %984 = vmatprep.subr.mxu0 0.0
        %985 = vmatpush1.xpose.msra.mxu0 0.0
        %986 = vmatprep.subr.mxu0 0.0
        %987 = vmatpush1.xpose.msra.mxu0 0.0
        %988 = vmatprep.subr.mxu0 0.0
        %989 = vmatpush1.xpose.msra.mxu0 0.0
        %990 = vmatprep.subr.mxu0 0.0
        %991 = vmatpush1.xpose.msra.mxu0 0.0
        %992 = vmatprep.subr.mxu0 0.0
        %993 = vmatpush1.xpose.msra.mxu0 0.0
        %994 = vmatprep.subr.mxu0 0.0
        %995 = vmatpush1.xpose.msra.mxu0 0.0
        %996 = vmatprep.subr.mxu0 0.0
        %997 = vmatpush1.xpose.msra.mxu0 0.0
        %998 = vmatprep.subr.mxu0 0.0
        %999 = vmatpush1.xpose.msra.mxu0 0.0
        %1000 = vmatprep.subr.mxu0 0.0
        %1001 = vmatpush1.xpose.msra.mxu0 0.0
        %1002 = vmatprep.subr.mxu0 0.0
        %1003 = vmatpush1.xpose.msra.mxu0 0.0
        %1004 = vmatprep.subr.mxu0 0.0
        %1005 = vmatpush1.xpose.msra.mxu0 0.0
        %1006 = vmatprep.subr.mxu0 0.0
        %1007 = vmatpush1.xpose.msra.mxu0 0.0
        %1008 = vmatprep.subr.mxu0 0.0
        %1009 = vmatpush1.xpose.msra.mxu0 0.0
        %1010 = vmatprep.subr.mxu0 0.0
        %1011 = vmatpush1.xpose.msra.mxu0 0.0
        %1012 = vmatprep.subr.mxu0 0.0
        %1013 = vmatpush1.xpose.msra.mxu0 0.0
        %1014 = vmatprep.subr.mxu0 0.0
        %1015 = vmatpush1.xpose.msra.mxu0 0.0
        %1016 = vmatprep.mubr.f32.mxu0 0.0
        %1017 = vmatmul.mubr.f32.gmra.mrb[0].mxu0 %v947
        %v1018 = vpop.f32.mrb[0].mxu0
        %v1019 = vadd.f32 0.0, %v1018
        %v1020 = vpop.f32.mrb[0].mxu0
        %1021 = vdwg.mxu0
        %v1023 = vsel %vm945, %v700, 0
        %v1026 = vsel %vm945, %v822, 0
        %1028 = vmatprep.subr.mxu0 0.0
        %1029 = vmatpush1.xpose.msra.mxu0 %v1026
        %1030 = vmatprep.subr.mxu0 0.0
        %1031 = vmatpush1.xpose.msra.mxu0 0.0
        %1032 = vmatprep.subr.mxu0 0.0
        %1033 = vmatpush1.xpose.msra.mxu0 0.0
        %1034 = vmatprep.subr.mxu0 0.0
        %1035 = vmatpush1.xpose.msra.mxu0 0.0
        %1036 = vmatprep.subr.mxu0 0.0
        %1037 = vmatpush1.xpose.msra.mxu0 0.0
        %1038 = vmatprep.subr.mxu0 0.0
        %1039 = vmatpush1.xpose.msra.mxu0 0.0
        %1040 = vmatprep.subr.mxu0 0.0
        %1041 = vmatpush1.xpose.msra.mxu0 0.0
        %1042 = vmatprep.subr.mxu0 0.0
        %1043 = vmatpush1.xpose.msra.mxu0 0.0
        %1044 = vmatprep.subr.mxu0 0.0
        %1045 = vmatpush1.xpose.msra.mxu0 0.0
        %1046 = vmatprep.subr.mxu0 0.0
        %1047 = vmatpush1.xpose.msra.mxu0 0.0
        %1048 = vmatprep.subr.mxu0 0.0
        %1049 = vmatpush1.xpose.msra.mxu0 0.0
        %1050 = vmatprep.subr.mxu0 0.0
        %1051 = vmatpush1.xpose.msra.mxu0 0.0
        %1052 = vmatprep.subr.mxu0 0.0
        %1053 = vmatpush1.xpose.msra.mxu0 0.0
        %1054 = vmatprep.subr.mxu0 0.0
        %1055 = vmatpush1.xpose.msra.mxu0 0.0
        %1056 = vmatprep.subr.mxu0 0.0
        %1057 = vmatpush1.xpose.msra.mxu0 0.0
        %1058 = vmatprep.subr.mxu0 0.0
        %1059 = vmatpush1.xpose.msra.mxu0 0.0
        %1060 = vmatprep.subr.mxu0 0.0
        %1061 = vmatpush1.xpose.msra.mxu0 0.0
        %1062 = vmatprep.subr.mxu0 0.0
        %1063 = vmatpush1.xpose.msra.mxu0 0.0
        %1064 = vmatprep.subr.mxu0 0.0
        %1065 = vmatpush1.xpose.msra.mxu0 0.0
        %1066 = vmatprep.subr.mxu0 0.0
        %1067 = vmatpush1.xpose.msra.mxu0 0.0
        %1068 = vmatprep.subr.mxu0 0.0
        %1069 = vmatpush1.xpose.msra.mxu0 0.0
        %1070 = vmatprep.subr.mxu0 0.0
        %1071 = vmatpush1.xpose.msra.mxu0 0.0
        %1072 = vmatprep.subr.mxu0 0.0
        %1073 = vmatpush1.xpose.msra.mxu0 0.0
        %1074 = vmatprep.subr.mxu0 0.0
        %1075 = vmatpush1.xpose.msra.mxu0 0.0
        %1076 = vmatprep.subr.mxu0 0.0
        %1077 = vmatpush1.xpose.msra.mxu0 0.0
        %1078 = vmatprep.subr.mxu0 0.0
        %1079 = vmatpush1.xpose.msra.mxu0 0.0
        %1080 = vmatprep.subr.mxu0 0.0
        %1081 = vmatpush1.xpose.msra.mxu0 0.0
        %1082 = vmatprep.subr.mxu0 0.0
        %1083 = vmatpush1.xpose.msra.mxu0 0.0
        %1084 = vmatprep.subr.mxu0 0.0
        %1085 = vmatpush1.xpose.msra.mxu0 0.0
        %1086 = vmatprep.subr.mxu0 0.0
        %1087 = vmatpush1.xpose.msra.mxu0 0.0
        %1088 = vmatprep.subr.mxu0 0.0
        %1089 = vmatpush1.xpose.msra.mxu0 0.0
        %1090 = vmatprep.subr.mxu0 0.0
        %1091 = vmatpush1.xpose.msra.mxu0 0.0
        %1092 = vmatprep.mubr.f32.mxu0 0.0
        %1093 = vmatmul.mubr.f32.gmra.mrb[0].mxu0 %v1023
        %v1094 = vpop.f32.mrb[0].mxu0
        %v1095 = vadd.f32 0.0, %v1094
        %v1096 = vpop.f32.mrb[0].mxu0
        %1097 = vdwg.mxu0
        %v1098 = vmul.f32 %v1019, 0.35355338
        %v1099 = vmul.f32 %v1095, 0.35355338
        %v1100 = vld [vmem:[%s494] sm:$0xff]
        %vm1101 = vcmp.gt.s32.totalorder %v1100, 0
        %v1102 = vsel %vm1101, 1, 0
        %vm1103 = vcmp.eq.s32.totalorder %v1102, 1
        %v1104 = vsel %vm1103, -1e+09, %v1098
        %v1105 = vsel %vm1103, -1e+09, %v1099
        %v1106 = vsel %vm945, %v1104, -inf
        %1107 = vmax.xlane.f32.xlu0 %v1106
        %v1108 = vpop.xlane.xlu0 %1107
        %v1109 = vsel %vm945, %v1105, -inf
        %1110 = vmax.xlane.f32.xlu0 %v1109
        %v1111 = vpop.xlane.xlu0 %1110
        %v1112 = vsub.f32 %v1104, %v1108
        %v1113 = vsub.f32 %v1105, %v1111
        %v1114 = vmul.f32 %v1112, 1.442695
        %v1115 = vpow.pop %v1114
        %v1116 = vmul.f32 %v1113, 1.442695
        %v1117 = vpow.pop %v1116
        %v1118 = vsel %vm945, %v1115, 0.0
        %1119 = vadd.xlane.f32.xlu0 %v1118
        %v1120 = vpop.xlane.xlu0 %1119
        %v1121 = vsel %vm945, %v1117, 0.0
        %1122 = vadd.xlane.f32.xlu0 %v1121
        %v1123 = vpop.xlane.xlu0 %1122
        %v1124 = vrcp.pop %v1120
        %v1125 = vmul.f32 %v1115, %v1124
        %v1126 = vrcp.pop %v1123
        %v1127 = vmul.f32 %v1117, %v1126
        %v1129 = vsel %vm945, %v1125, 0
        %1131 = vmatprep.subr.mxu0 0.0
        %1132 = vmatpush1.msra.mxu0 %v943
        %1133 = vmatprep.subr.mxu0 0.0
        %1134 = vmatpush1.msra.mxu0 0.0
        %1135 = vmatprep.subr.mxu0 0.0
        %1136 = vmatpush1.msra.mxu0 0.0
        %1137 = vmatprep.subr.mxu0 0.0
        %1138 = vmatpush1.msra.mxu0 0.0
        %1139 = vmatprep.subr.mxu0 0.0
        %1140 = vmatpush1.msra.mxu0 0.0
        %1141 = vmatprep.subr.mxu0 0.0
        %1142 = vmatpush1.msra.mxu0 0.0
        %1143 = vmatprep.subr.mxu0 0.0
        %1144 = vmatpush1.msra.mxu0 0.0
        %1145 = vmatprep.subr.mxu0 0.0
        %1146 = vmatpush1.msra.mxu0 0.0
        %1147 = vmatprep.subr.mxu0 0.0
        %1148 = vmatpush1.msra.mxu0 0.0
        %1149 = vmatprep.subr.mxu0 0.0
        %1150 = vmatpush1.msra.mxu0 0.0
        %1151 = vmatprep.subr.mxu0 0.0
        %1152 = vmatpush1.msra.mxu0 0.0
        %1153 = vmatprep.subr.mxu0 0.0
        %1154 = vmatpush1.msra.mxu0 0.0
        %1155 = vmatprep.subr.mxu0 0.0
        %1156 = vmatpush1.msra.mxu0 0.0
        %1157 = vmatprep.subr.mxu0 0.0
        %1158 = vmatpush1.msra.mxu0 0.0
        %1159 = vmatprep.subr.mxu0 0.0
        %1160 = vmatpush1.msra.mxu0 0.0
        %1161 = vmatprep.subr.mxu0 0.0
        %1162 = vmatpush1.msra.mxu0 0.0
        %1163 = vmatprep.subr.mxu0 0.0
        %1164 = vmatpush1.msra.mxu0 0.0
        %1165 = vmatprep.subr.mxu0 0.0
        %1166 = vmatpush1.msra.mxu0 0.0
        %1167 = vmatprep.subr.mxu0 0.0
        %1168 = vmatpush1.msra.mxu0 0.0
        %1169 = vmatprep.subr.mxu0 0.0
        %1170 = vmatpush1.msra.mxu0 0.0
        %1171 = vmatprep.subr.mxu0 0.0
        %1172 = vmatpush1.msra.mxu0 0.0
        %1173 = vmatprep.subr.mxu0 0.0
        %1174 = vmatpush1.msra.mxu0 0.0
        %1175 = vmatprep.subr.mxu0 0.0
        %1176 = vmatpush1.msra.mxu0 0.0
        %1177 = vmatprep.subr.mxu0 0.0
        %1178 = vmatpush1.msra.mxu0 0.0
        %1179 = vmatprep.subr.mxu0 0.0
        %1180 = vmatpush1.msra.mxu0 0.0
        %1181 = vmatprep.subr.mxu0 0.0
        %1182 = vmatpush1.msra.mxu0 0.0
        %1183 = vmatprep.subr.mxu0 0.0
        %1184 = vmatpush1.msra.mxu0 0.0
        %1185 = vmatprep.subr.mxu0 0.0
        %1186 = vmatpush1.msra.mxu0 0.0
        %1187 = vmatprep.subr.mxu0 0.0
        %1188 = vmatpush1.msra.mxu0 0.0
        %1189 = vmatprep.subr.mxu0 0.0
        %1190 = vmatpush1.msra.mxu0 0.0
        %1191 = vmatprep.subr.mxu0 0.0
        %1192 = vmatpush1.msra.mxu0 0.0
        %1193 = vmatprep.subr.mxu0 0.0
        %1194 = vmatpush1.msra.mxu0 0.0
        %1195 = vmatprep.mubr.f32.mxu0 0.0
        %1196 = vmatmul.mubr.f32.gmra.mrb[0].mxu0 %v1129
        %v1197 = vpop.f32.mrb[0].mxu0
        %v1198 = vadd.f32 0.0, %v1197
        %v1199 = vpop.f32.mrb[0].mxu0
        %1200 = vdwg.mxu0
        %v1202 = vsel %vm945, %v1127, 0
        %1204 = vmatprep.subr.mxu0 0.0
        %1205 = vmatpush1.msra.mxu0 %v944
        %1206 = vmatprep.subr.mxu0 0.0
        %1207 = vmatpush1.msra.mxu0 0.0
        %1208 = vmatprep.subr.mxu0 0.0
        %1209 = vmatpush1.msra.mxu0 0.0
        %1210 = vmatprep.subr.mxu0 0.0
        %1211 = vmatpush1.msra.mxu0 0.0
        %1212 = vmatprep.subr.mxu0 0.0
        %1213 = vmatpush1.msra.mxu0 0.0
        %1214 = vmatprep.subr.mxu0 0.0
        %1215 = vmatpush1.msra.mxu0 0.0
        %1216 = vmatprep.subr.mxu0 0.0
        %1217 = vmatpush1.msra.mxu0 0.0
        %1218 = vmatprep.subr.mxu0 0.0
        %1219 = vmatpush1.msra.mxu0 0.0
        %1220 = vmatprep.subr.mxu0 0.0
        %1221 = vmatpush1.msra.mxu0 0.0
        %1222 = vmatprep.subr.mxu0 0.0
        %1223 = vmatpush1.msra.mxu0 0.0
        %1224 = vmatprep.subr.mxu0 0.0
        %1225 = vmatpush1.msra.mxu0 0.0
        %1226 = vmatprep.subr.mxu0 0.0
        %1227 = vmatpush1.msra.mxu0 0.0
        %1228 = vmatprep.subr.mxu0 0.0
        %1229 = vmatpush1.msra.mxu0 0.0
        %1230 = vmatprep.subr.mxu0 0.0
        %1231 = vmatpush1.msra.mxu0 0.0
        %1232 = vmatprep.subr.mxu0 0.0
        %1233 = vmatpush1.msra.mxu0 0.0
        %1234 = vmatprep.subr.mxu0 0.0
        %1235 = vmatpush1.msra.mxu0 0.0
        %1236 = vmatprep.subr.mxu0 0.0
        %1237 = vmatpush1.msra.mxu0 0.0
        %1238 = vmatprep.subr.mxu0 0.0
        %1239 = vmatpush1.msra.mxu0 0.0
        %1240 = vmatprep.subr.mxu0 0.0
        %1241 = vmatpush1.msra.mxu0 0.0
        %1242 = vmatprep.subr.mxu0 0.0
        %1243 = vmatpush1.msra.mxu0 0.0
        %1244 = vmatprep.subr.mxu0 0.0
        %1245 = vmatpush1.msra.mxu0 0.0
        %1246 = vmatprep.subr.mxu0 0.0
        %1247 = vmatpush1.msra.mxu0 0.0
        %1248 = vmatprep.subr.mxu0 0.0
        %1249 = vmatpush1.msra.mxu0 0.0
        %1250 = vmatprep.subr.mxu0 0.0
        %1251 = vmatpush1.msra.mxu0 0.0
        %1252 = vmatprep.subr.mxu0 0.0
        %1253 = vmatpush1.msra.mxu0 0.0
        %1254 = vmatprep.subr.mxu0 0.0
        %1255 = vmatpush1.msra.mxu0 0.0
        %1256 = vmatprep.subr.mxu0 0.0
        %1257 = vmatpush1.msra.mxu0 0.0
        %1258 = vmatprep.subr.mxu0 0.0
        %1259 = vmatpush1.msra.mxu0 0.0
        %1260 = vmatprep.subr.mxu0 0.0
        %1261 = vmatpush1.msra.mxu0 0.0
        %1262 = vmatprep.subr.mxu0 0.0
        %1263 = vmatpush1.msra.mxu0 0.0
        %1264 = vmatprep.subr.mxu0 0.0
        %1265 = vmatpush1.msra.mxu0 0.0
        %1266 = vmatprep.subr.mxu0 0.0
        %1267 = vmatpush1.msra.mxu0 0.0
        %1268 = vmatprep.mubr.f32.mxu0 0.0
        %1269 = vmatmul.mubr.f32.gmra.mrb[0].mxu0 %v1202
        %v1270 = vpop.f32.mrb[0].mxu0
        %v1271 = vadd.f32 0.0, %v1270
        %v1272 = vpop.f32.mrb[0].mxu0
        %1273 = vdwg.mxu0
        %v1274 = vcombine.high %v1198, 0.0
        %v1276 = vunpack.c.l.s4 1983009808
        %v1277 = vunpack.c.0.s8 %v1276
        %v1278 = vlaneseq
        %v1279 = vshrl.u32 %v1278, 7
        %v1280 = vsub.s32 %v1277, %v1279
        %v1281 = vrot.slane %v1198, %v1280
        %v1283 = vunpack.c.l.s4 1983009808
        %v1284 = vunpack.c.0.s8 %v1283
        %v1285 = vlaneseq
        %v1286 = vshrl.u32 %v1285, 7
        %v1287 = vsub.s32 %v1284, %v1286
        %v1288 = vrot.slane %v1274, %v1287
        %v1289 = vcombine.high %v1271, 0.0
        %v1291 = vunpack.c.l.s4 1983009808
        %v1292 = vunpack.c.0.s8 %v1291
        %v1293 = vlaneseq
        %v1294 = vshrl.u32 %v1293, 7
        %v1295 = vsub.s32 %v1292, %v1294
        %v1296 = vrot.slane %v1271, %v1295
        %v1298 = vunpack.c.l.s4 1983009808
        %v1299 = vunpack.c.0.s8 %v1298
        %v1300 = vlaneseq
        %v1301 = vshrl.u32 %v1300, 7
        %v1302 = vsub.s32 %v1299, %v1301
        %v1303 = vrot.slane %v1289, %v1302
        %v1304 = vcombine.low %v1281, %v1296
        %v1305 = vcombine.high %v1281, %v1296
        %v1307 = vunpack.c.l.s4 1934713408
        %v1308 = vunpack.c.0.s8 %v1307
        %v1309 = vlaneseq
        %v1310 = vshrl.u32 %v1309, 7
        %v1311 = vsub.s32 %v1308, %v1310
        %v1312 = vrot.slane %v1304, %v1311
        %v1314 = vunpack.c.l.s4 1934713408
        %v1315 = vunpack.c.0.s8 %v1314
        %v1316 = vlaneseq
        %v1317 = vshrl.u32 %v1316, 7
        %v1318 = vsub.s32 %v1315, %v1317
        %v1319 = vrot.slane %v1305, %v1318
        %v1320 = vcombine.low %v1288, %v1303
        %v1321 = vcombine.high %v1288, %v1303
        %v1323 = vunpack.c.l.s4 1934713408
        %v1324 = vunpack.c.0.s8 %v1323
        %v1325 = vlaneseq
        %v1326 = vshrl.u32 %v1325, 7
        %v1327 = vsub.s32 %v1324, %v1326
        %v1328 = vrot.slane %v1320, %v1327
        %v1330 = vunpack.c.l.s4 1934713408
        %v1331 = vunpack.c.0.s8 %v1330
        %v1332 = vlaneseq
        %v1333 = vshrl.u32 %v1332, 7
        %v1334 = vsub.s32 %v1331, %v1333
        %v1335 = vrot.slane %v1321, %v1334
        %v1336 = vcombine.high %v1312, 0.0
        %v1337 = vcombine.high %v1319, 0.0
        %v1338 = vcombine.high %v1328, 0.0
        %v1339 = vcombine.high %v1335, 0.0
        %v1340 = vcombine.low %v1312, %v1319
        %v1342 = vunpack.c.l.s4 1983009808
        %v1343 = vunpack.c.0.s8 %v1342
        %v1344 = vlaneseq
        %v1345 = vshrl.u32 %v1344, 7
        %v1346 = vsub.s32 %v1343, %v1345
        %v1347 = vrot.slane %v1340, %v1346
        %v1348 = vcombine.low %v1336, %v1337
        %v1350 = vunpack.c.l.s4 1983009808
        %v1351 = vunpack.c.0.s8 %v1350
        %v1352 = vlaneseq
        %v1353 = vshrl.u32 %v1352, 7
        %v1354 = vsub.s32 %v1351, %v1353
        %v1355 = vrot.slane %v1348, %v1354
        %v1356 = vcombine.low %v1328, %v1335
        %v1358 = vunpack.c.l.s4 1983009808
        %v1359 = vunpack.c.0.s8 %v1358
        %v1360 = vlaneseq
        %v1361 = vshrl.u32 %v1360, 7
        %v1362 = vsub.s32 %v1359, %v1361
        %v1363 = vrot.slane %v1356, %v1362
        %v1364 = vcombine.low %v1338, %v1339
        %v1366 = vunpack.c.l.s4 1983009808
        %v1367 = vunpack.c.0.s8 %v1366
        %v1368 = vlaneseq
        %v1369 = vshrl.u32 %v1368, 7
        %v1370 = vsub.s32 %v1367, %v1369
        %v1371 = vrot.slane %v1364, %v1370
        %v1372 = vcombine.low %v1347, %v1355
        %v1374 = vunpack.c.l.s4 1934713408
        %v1375 = vunpack.c.0.s8 %v1374
        %v1376 = vlaneseq
        %v1377 = vshrl.u32 %v1376, 7
        %v1378 = vsub.s32 %v1375, %v1377
        %v1379 = vrot.slane %v1372, %v1378
        %v1380 = vcombine.low %v1363, %v1371
        %v1382 = vunpack.c.l.s4 1934713408
        %v1383 = vunpack.c.0.s8 %v1382
        %v1384 = vlaneseq
        %v1385 = vshrl.u32 %v1384, 7
        %v1386 = vsub.s32 %v1383, %v1385
        %v1387 = vrot.slane %v1380, %v1386
        %v1388 = vcombine.low %v1379, %v1387
        %v1389 = vcombine.high %v1379, %v1387
        %1391 = vrot.lane.b32.xlu0 %v1389, 8
        %v1392 = vpop.permute.xlu0 %1391
        %v1394 = vsel %vm945, %v1388, %v1392
        %v1395 = vld [vmem:[#allocation2] sm:$0xff]
        %v1396 = vld [vmem:[#allocation2 + $0x8] sm:$0xff]
        %v1397 = vld [vmem:[%s5] sm:$0x1]
        %v1399 = vlaneseq
        %v1400 = vshrl.u32 %v1399, 7
        %v1401 = vsub.s32 0, %v1400
        %v1402 = vrot.slane %v1397, %v1401
        %vm1404 = vcmask 130048
        %v1406 = vsel %vm1404, %v1394, 0
        %1408 = vmatprep.subr.mxu0 0.0
        %1409 = vmatpush1.msra.mxu0 %v1395
        %1410 = vmatprep.subr.mxu0 0.0
        %1411 = vmatpush1.msra.mxu0 %v1396
        %1412 = vmatprep.subr.mxu0 0.0
        %1413 = vmatpush1.msra.mxu0 0.0
        %1414 = vmatprep.subr.mxu0 0.0
        %1415 = vmatpush1.msra.mxu0 0.0
        %1416 = vmatprep.subr.mxu0 0.0
        %1417 = vmatpush1.msra.mxu0 0.0
        %1418 = vmatprep.subr.mxu0 0.0
        %1419 = vmatpush1.msra.mxu0 0.0
        %1420 = vmatprep.subr.mxu0 0.0
        %1421 = vmatpush1.msra.mxu0 0.0
        %1422 = vmatprep.subr.mxu0 0.0
        %1423 = vmatpush1.msra.mxu0 0.0
        %1424 = vmatprep.subr.mxu0 0.0
        %1425 = vmatpush1.msra.mxu0 0.0
        %1426 = vmatprep.subr.mxu0 0.0
        %1427 = vmatpush1.msra.mxu0 0.0
        %1428 = vmatprep.subr.mxu0 0.0
        %1429 = vmatpush1.msra.mxu0 0.0
        %1430 = vmatprep.subr.mxu0 0.0
        %1431 = vmatpush1.msra.mxu0 0.0
        %1432 = vmatprep.subr.mxu0 0.0
        %1433 = vmatpush1.msra.mxu0 0.0
        %1434 = vmatprep.subr.mxu0 0.0
        %1435 = vmatpush1.msra.mxu0 0.0
        %1436 = vmatprep.subr.mxu0 0.0
        %1437 = vmatpush1.msra.mxu0 0.0
        %1438 = vmatprep.subr.mxu0 0.0
        %1439 = vmatpush1.msra.mxu0 0.0
        %1440 = vmatprep.subr.mxu0 0.0
        %1441 = vmatpush1.msra.mxu0 0.0
        %1442 = vmatprep.subr.mxu0 0.0
        %1443 = vmatpush1.msra.mxu0 0.0
        %1444 = vmatprep.subr.mxu0 0.0
        %1445 = vmatpush1.msra.mxu0 0.0
        %1446 = vmatprep.subr.mxu0 0.0
        %1447 = vmatpush1.msra.mxu0 0.0
        %1448 = vmatprep.subr.mxu0 0.0
        %1449 = vmatpush1.msra.mxu0 0.0
        %1450 = vmatprep.subr.mxu0 0.0
        %1451 = vmatpush1.msra.mxu0 0.0
        %1452 = vmatprep.subr.mxu0 0.0
        %1453 = vmatpush1.msra.mxu0 0.0
        %1454 = vmatprep.subr.mxu0 0.0
        %1455 = vmatpush1.msra.mxu0 0.0
        %1456 = vmatprep.subr.mxu0 0.0
        %1457 = vmatpush1.msra.mxu0 0.0
        %1458 = vmatprep.subr.mxu0 0.0
        %1459 = vmatpush1.msra.mxu0 0.0
        %1460 = vmatprep.subr.mxu0 0.0
        %1461 = vmatpush1.msra.mxu0 0.0
        %1462 = vmatprep.subr.mxu0 0.0
        %1463 = vmatpush1.msra.mxu0 0.0
        %1464 = vmatprep.subr.mxu0 0.0
        %1465 = vmatpush1.msra.mxu0 0.0
        %1466 = vmatprep.subr.mxu0 0.0
        %1467 = vmatpush1.msra.mxu0 0.0
        %1468 = vmatprep.subr.mxu0 0.0
        %1469 = vmatpush1.msra.mxu0 0.0
        %1470 = vmatprep.subr.mxu0 0.0
        %1471 = vmatpush1.msra.mxu0 0.0
        %1472 = vmatprep.mubr.f32.mxu0 0.0
        %1473 = vmatmul.mubr.f32.gmra.mrb[0].mxu0 %v1406
        %v1474 = vpop.f32.mrb[0].mxu0
        %v1475 = vadd.f32 %v1402, %v1474
        %v1476 = vpop.f32.mrb[0].mxu0
        %1477 = vdwg.mxu0
        %v1478 = vadd.f32 %v1475, %v495
        %v1479 = vld [vmem:[%s6] sm:$0x1]
        %v1480 = vld [vmem:[%s7] sm:$0x1]
        %v1481 = vsel %vm507, %v1478, 0.0
        %1482 = vadd.xlane.f32.xlu0 %v1481
        %v1483 = vpop.xlane.xlu0 %1482
        %v1484 = vrcp.pop 32.0
        %v1485 = vmul.f32 %v1483, %v1484
        %v1486 = vsub.f32 %v1478, %v1485
        %v1487 = vmul.f32 %v1486, %v1486
        %v1488 = vsel %vm507, %v1487, 0.0
        %1489 = vadd.xlane.f32.xlu0 %v1488
        %v1490 = vpop.xlane.xlu0 %1489
        %v1491 = vmul.f32 %v1490, %v1484
        %v1492 = vadd.f32 %v1491, 1e-05
        %v1493 = vrsqrt.pop %v1492
        %v1494 = vmul.f32 %v1486, %v1493
        %v1496 = vlaneseq
        %v1497 = vshrl.u32 %v1496, 7
        %v1498 = vsub.s32 0, %v1497
        %v1499 = vrot.slane %v1479, %v1498
        %v1501 = vmul.f32 %v1494, %v1499
        %v1503 = vlaneseq
        %v1504 = vshrl.u32 %v1503, 7
        %v1505 = vsub.s32 0, %v1504
        %v1506 = vrot.slane %v1480, %v1505
        %v1508 = vadd.f32 %v1501, %v1506
        %v1509 = vld [vmem:[%s8] sm:$0xff]
        %v1510 = vld [vmem:[%s8 + $0x8] sm:$0xff]
        %v1511 = vld [vmem:[%s8 + $0x10] sm:$0xff]
        %v1512 = vld [vmem:[%s8 + $0x18] sm:$0xff]
        %v1513 = vld [vmem:[%s9] sm:$0x1]
        %v1515 = vlaneseq
        %v1516 = vshrl.u32 %v1515, 7
        %v1517 = vsub.s32 0, %v1516
        %v1518 = vrot.slane %v1513, %v1517
        %v1521 = vsel %vm507, %v1508, 0
        %1523 = vmatprep.subr.mxu0 0.0
        %1524 = vmatpush1.msra.mxu0 %v1509
        %1525 = vmatprep.subr.mxu0 0.0
        %1526 = vmatpush1.msra.mxu0 %v1510
        %1527 = vmatprep.subr.mxu0 0.0
        %1528 = vmatpush1.msra.mxu0 %v1511
        %1529 = vmatprep.subr.mxu0 0.0
        %1530 = vmatpush1.msra.mxu0 %v1512
        %1531 = vmatprep.subr.mxu0 0.0
        %1532 = vmatpush1.msra.mxu0 0.0
        %1533 = vmatprep.subr.mxu0 0.0
        %1534 = vmatpush1.msra.mxu0 0.0
        %1535 = vmatprep.subr.mxu0 0.0
        %1536 = vmatpush1.msra.mxu0 0.0
        %1537 = vmatprep.subr.mxu0 0.0
        %1538 = vmatpush1.msra.mxu0 0.0
        %1539 = vmatprep.subr.mxu0 0.0
        %1540 = vmatpush1.msra.mxu0 0.0
        %1541 = vmatprep.subr.mxu0 0.0
        %1542 = vmatpush1.msra.mxu0 0.0
        %1543 = vmatprep.subr.mxu0 0.0
        %1544 = vmatpush1.msra.mxu0 0.0
        %1545 = vmatprep.subr.mxu0 0.0
        %1546 = vmatpush1.msra.mxu0 0.0
        %1547 = vmatprep.subr.mxu0 0.0
        %1548 = vmatpush1.msra.mxu0 0.0
        %1549 = vmatprep.subr.mxu0 0.0
        %1550 = vmatpush1.msra.mxu0 0.0
        %1551 = vmatprep.subr.mxu0 0.0
        %1552 = vmatpush1.msra.mxu0 0.0
        %1553 = vmatprep.subr.mxu0 0.0
        %1554 = vmatpush1.msra.mxu0 0.0
        %1555 = vmatprep.subr.mxu0 0.0
        %1556 = vmatpush1.msra.mxu0 0.0
        %1557 = vmatprep.subr.mxu0 0.0
        %1558 = vmatpush1.msra.mxu0 0.0
        %1559 = vmatprep.subr.mxu0 0.0
        %1560 = vmatpush1.msra.mxu0 0.0
        %1561 = vmatprep.subr.mxu0 0.0
        %1562 = vmatpush1.msra.mxu0 0.0
        %1563 = vmatprep.subr.mxu0 0.0
        %1564 = vmatpush1.msra.mxu0 0.0
        %1565 = vmatprep.subr.mxu0 0.0
        %1566 = vmatpush1.msra.mxu0 0.0
        %1567 = vmatprep.subr.mxu0 0.0
        %1568 = vmatpush1.msra.mxu0 0.0
        %1569 = vmatprep.subr.mxu0 0.0
        %1570 = vmatpush1.msra.mxu0 0.0
        %1571 = vmatprep.subr.mxu0 0.0
        %1572 = vmatpush1.msra.mxu0 0.0
        %1573 = vmatprep.subr.mxu0 0.0
        %1574 = vmatpush1.msra.mxu0 0.0
        %1575 = vmatprep.subr.mxu0 0.0
        %1576 = vmatpush1.msra.mxu0 0.0
        %1577 = vmatprep.subr.mxu0 0.0
        %1578 = vmatpush1.msra.mxu0 0.0
        %1579 = vmatprep.subr.mxu0 0.0
        %1580 = vmatpush1.msra.mxu0 0.0
        %1581 = vmatprep.subr.mxu0 0.0
        %1582 = vmatpush1.msra.mxu0 0.0
        %1583 = vmatprep.subr.mxu0 0.0
        %1584 = vmatpush1.msra.mxu0 0.0
        %1585 = vmatprep.subr.mxu0 0.0
        %1586 = vmatpush1.msra.mxu0 0.0
        %1587 = vmatprep.mubr.f32.mxu0 0.0
        %1588 = vmatmul.mubr.f32.gmra.mrb[0].mxu0 %v1521
        %v1589 = vpop.f32.mrb[0].mxu0
        %v1590 = vadd.f32 %v1518, %v1589
        %v1591 = vpop.f32.mrb[0].mxu0
        %1592 = vdwg.mxu0
        %v1593 = vmax.f32 %v1590, 0.0
        %v1594 = vld [vmem:[%s10] sm:$0xff]
        %v1595 = vld [vmem:[%s10 + $0x8] sm:$0xff]
        %v1596 = vld [vmem:[%s10 + $0x10] sm:$0xff]
        %v1597 = vld [vmem:[%s10 + $0x18] sm:$0xff]
        %v1598 = vld [vmem:[%s10 + $0x20] sm:$0xff]
        %v1599 = vld [vmem:[%s10 + $0x28] sm:$0xff]
        %v1600 = vld [vmem:[%s10 + $0x30] sm:$0xff]
        %v1601 = vld [vmem:[%s10 + $0x38] sm:$0xff]
        %v1602 = vld [vmem:[%s11] sm:$0x1]
        %v1604 = vlaneseq
        %v1605 = vshrl.u32 %v1604, 7
        %v1606 = vsub.s32 0, %v1605
        %v1607 = vrot.slane %v1602, %v1606
        %vm1609 = vcmask 523264
        %v1611 = vsel %vm1609, %v1593, 0
        %1613 = vmatprep.subr.mxu0 0.0
        %1614 = vmatpush1.msra.mxu0 %v1594
        %1615 = vmatprep.subr.mxu0 0.0
        %1616 = vmatpush1.msra.mxu0 %v1595
        %1617 = vmatprep.subr.mxu0 0.0
        %1618 = vmatpush1.msra.mxu0 %v1596
        %1619 = vmatprep.subr.mxu0 0.0
        %1620 = vmatpush1.msra.mxu0 %v1597
        %1621 = vmatprep.subr.mxu0 0.0
        %1622 = vmatpush1.msra.mxu0 %v1598
        %1623 = vmatprep.subr.mxu0 0.0
        %1624 = vmatpush1.msra.mxu0 %v1599
        %1625 = vmatprep.subr.mxu0 0.0
        %1626 = vmatpush1.msra.mxu0 %v1600
        %1627 = vmatprep.subr.mxu0 0.0
        %1628 = vmatpush1.msra.mxu0 %v1601
        %1629 = vmatprep.subr.mxu0 0.0
        %1630 = vmatpush1.msra.mxu0 0.0
        %1631 = vmatprep.subr.mxu0 0.0
        %1632 = vmatpush1.msra.mxu0 0.0
        %1633 = vmatprep.subr.mxu0 0.0
        %1634 = vmatpush1.msra.mxu0 0.0
        %1635 = vmatprep.subr.mxu0 0.0
        %1636 = vmatpush1.msra.mxu0 0.0
        %1637 = vmatprep.subr.mxu0 0.0
        %1638 = vmatpush1.msra.mxu0 0.0
        %1639 = vmatprep.subr.mxu0 0.0
        %1640 = vmatpush1.msra.mxu0 0.0
        %1641 = vmatprep.subr.mxu0 0.0
        %1642 = vmatpush1.msra.mxu0 0.0
        %1643 = vmatprep.subr.mxu0 0.0
        %1644 = vmatpush1.msra.mxu0 0.0
        %1645 = vmatprep.subr.mxu0 0.0
        %1646 = vmatpush1.msra.mxu0 0.0
        %1647 = vmatprep.subr.mxu0 0.0
        %1648 = vmatpush1.msra.mxu0 0.0
        %1649 = vmatprep.subr.mxu0 0.0
        %1650 = vmatpush1.msra.mxu0 0.0
        %1651 = vmatprep.subr.mxu0 0.0
        %1652 = vmatpush1.msra.mxu0 0.0
        %1653 = vmatprep.subr.mxu0 0.0
        %1654 = vmatpush1.msra.mxu0 0.0
        %1655 = vmatprep.subr.mxu0 0.0
        %1656 = vmatpush1.msra.mxu0 0.0
        %1657 = vmatprep.subr.mxu0 0.0
        %1658 = vmatpush1.msra.mxu0 0.0
        %1659 = vmatprep.subr.mxu0 0.0
        %1660 = vmatpush1.msra.mxu0 0.0
        %1661 = vmatprep.subr.mxu0 0.0
        %1662 = vmatpush1.msra.mxu0 0.0
        %1663 = vmatprep.subr.mxu0 0.0
        %1664 = vmatpush1.msra.mxu0 0.0
        %1665 = vmatprep.subr.mxu0 0.0
        %1666 = vmatpush1.msra.mxu0 0.0
        %1667 = vmatprep.subr.mxu0 0.0
        %1668 = vmatpush1.msra.mxu0 0.0
        %1669 = vmatprep.subr.mxu0 0.0
        %1670 = vmatpush1.msra.mxu0 0.0
        %1671 = vmatprep.subr.mxu0 0.0
        %1672 = vmatpush1.msra.mxu0 0.0
        %1673 = vmatprep.subr.mxu0 0.0
        %1674 = vmatpush1.msra.mxu0 0.0
        %1675 = vmatprep.subr.mxu0 0.0
        %1676 = vmatpush1.msra.mxu0 0.0
        %1677 = vmatprep.mubr.f32.mxu0 0.0
        %1678 = vmatmul.mubr.f32.gmra.mrb[0].mxu0 %v1611
        %v1679 = vpop.f32.mrb[0].mxu0
        %v1680 = vadd.f32 %v1607, %v1679
        %v1681 = vpop.f32.mrb[0].mxu0
        %1682 = vdwg.mxu0
        %v1683 = vadd.f32 %v1508, %v1680
        %v1684 = vld [vmem:[%s12] sm:$0x1]
        %v1685 = vld [vmem:[%s13] sm:$0x1]
        %v1686 = vsel %vm507, %v1683, 0.0
        %1687 = vadd.xlane.f32.xlu0 %v1686
        %v1688 = vpop.xlane.xlu0 %1687
        %v1689 = vmul.f32 %v1688, %v1484
        %v1690 = vsub.f32 %v1683, %v1689
        %v1691 = vmul.f32 %v1690, %v1690
        %v1692 = vsel %vm507, %v1691, 0.0
        %1693 = vadd.xlane.f32.xlu0 %v1692
        %v1694 = vpop.xlane.xlu0 %1693
        %v1695 = vmul.f32 %v1694, %v1484
        %v1696 = vadd.f32 %v1695, 1e-05
        %v1697 = vrsqrt.pop %v1696
        %v1698 = vmul.f32 %v1690, %v1697
        %v1700 = vlaneseq
        %v1701 = vshrl.u32 %v1700, 7
        %v1702 = vsub.s32 0, %v1701
        %v1703 = vrot.slane %v1684, %v1702
        %v1705 = vmul.f32 %v1698, %v1703
        %v1707 = vlaneseq
        %v1708 = vshrl.u32 %v1707, 7
        %v1709 = vsub.s32 0, %v1708
        %v1710 = vrot.slane %v1685, %v1709
        %v1712 = vadd.f32 %v1705, %v1710
        %1713 = vst.msk [vmem:[%s486] sm:$0xff] %vm507, %v1712
        %s1714 = sand.u32 %s341, 1
        %s1715 = scalar_lea.sflag [#allocation4], %s1714
        %s1716 = sand.u32 %s341, 1
        %s1717 = smul.addr %s1716, 8
        %s1718 = scalar_lea.vmem [#allocation5], %s1717
        // Predicated region
        $region81: #{tpu_custom_call.1} parent=75 // pred_check
          %p1719 = pneg %p351
        $region82: #{tpu_custom_call.1} parent=75 // pred_check_branch
          %1721 = sbr.rel (%p1719) target = $region84
        $region83: #{tpu_custom_call.1} parent=75 // pred_region
          %s1723 = ssub.s32 128, 128
          %1724 = vsyncadd %s1715, %s1723
          %s1725 = smul.addr %s29, 128
          %s1726 = scalar_lea.hbm %s14, %s1725
          %s1728 = sshll.u32 %s1718, 4
          %s1729 = int_to_ptr.vmem [resolvable:$true] %s1728
          %1731 = dma.vmem_to_hbm [thread:$0]  %s1729, 128, %s1726, %s1715
        $region84: #{tpu_custom_call.1} parent=75 // pred_fallthru
          _
      $region76: #{tpu_custom_call.1} parent=5 // pred_fallthru
        _
      %p1732 = scmp.le.s32.totalorder 2, %s24
      // Predicated region
      $region85: #{tpu_custom_call.1} parent=5 // pred_check
        %p1733 = pneg %p1732
      $region86: #{tpu_custom_call.1} parent=5 // pred_check_branch
        %1735 = sbr.rel (%p1733) target = $region88
      $region87: #{tpu_custom_call.1} parent=5 // pred_region
        %s1736 = ssub.s32 %s24, 2
        // Predicated region
        $region89: #{tpu_custom_call.1} parent=87 // pred_check
          %p1737 = pneg %p357
        $region90: #{tpu_custom_call.1} parent=87 // pred_check_branch
          %1739 = sbr.rel (%p1737) target = $region92
        $region91: #{tpu_custom_call.1} parent=87 // pred_region
          %s1740 = sand.u32 %s342, 1
          %s1741 = scalar_lea.sflag [#allocation4], %s1740
          %s1742 = sand.u32 %s342, 1
          %s1743 = smul.addr %s1742, 8
          %s1744 = scalar_lea.vmem [#allocation5], %s1743
          %1745 = dma.done %s1741, 128
        $region92: #{tpu_custom_call.1} parent=87 // pred_fallthru
          _
      $region88: #{tpu_custom_call.1} parent=5 // pred_fallthru
        _
    $region6: #{tpu_custom_call.1} parent=1 // loop_footer
      %s28 = sadd.s32 1, %s24
    $region7: #{tpu_custom_call.1} parent=1 // loop_footer_branch
      %23 = sbr.rel target = $region3
    $region8: #{tpu_custom_call.1} parent=1 // loop_exit
      _
    %1746 = vsyncpa [#allocation3], 1
    %s1747 = scalar_lea.sflag [#allocation3], 1
    %1748 = vsyncpa %s1747, 1
    %1749 = vsyncpa [#allocation4], 1
    %s1750 = scalar_lea.sflag [#allocation4], 1
    %1751 = vsyncpa %s1750, 1

</llo_original>
